<compile_context>
chip_gen: v7x
topology: tpu7x:2x2x1
jax: 0.10.0
libtpu: 0.0.40
codegen_flags: <defaults>
</compile_context>

<pallas_src>
import functools

import jax
import jax.numpy as jnp
from jax.experimental import pallas as pl
from jax.experimental.pallas import tpu as pltpu

# Above the 16/32 MiB scoped defaults, below the 64 MiB physical VMEM on v7x.
VMEM_LIMIT_BYTES = 48 * 1024 * 1024


# ----------------------------------------------------------------------------
# In-kernel helpers
# ----------------------------------------------------------------------------
def _layernorm(x, g, b, eps=1e-5):
    """Two-pass f32 LayerNorm (matches torch LayerNorm numerics closely)."""
    mu = jnp.mean(x, axis=-1, keepdims=True)
    xc = x - mu
    var = jnp.mean(xc * xc, axis=-1, keepdims=True)
    return xc * jax.lax.rsqrt(var + eps) * g + b


def _quick_gelu(x):
    """QuickGELU: x * sigmoid(1.702 * x), computed in f32."""
    return x * (1.0 / (1.0 + jnp.exp(-1.702 * x)))


# ----------------------------------------------------------------------------
# Pallas kernels
# ----------------------------------------------------------------------------
def transformer_layer_kernel(x_ref, ln1_g, ln1_b, wqkv_ref, bqkv_ref,
                             wo_ref, bo_ref, ln2_g, ln2_b,
                             wfc_ref, bfc_ref, wpr_ref, bpr_ref,
                             o_ref, *, num_heads):
    """One ResidualAttentionBlock; grid axis = layer index.

    The activation (B, L, D) lives in the constant-index output block and is
    carried across grid steps (layers). Weight refs are (1, ...) slices of the
    stacked per-layer weights (indexed by the layer grid axis).
    """
    f32, bf16 = jnp.float32, jnp.bfloat16

    @pl.when(pl.program_id(0) == 0)
    def _():
        o_ref[...] = x_ref[...]

    x = o_ref[...]                               # (B, L, D) f32, layer-resident
    B, L, D = x.shape
    H = num_heads
    hd = D // H
    xf = x.reshape(B * L, D)

    # ---- attention branch (pre-LN) ----
    h = _layernorm(xf, ln1_g[0], ln1_b[0]).astype(bf16)
    # Single lane-dense QKV matmul; 1/sqrt(hd) already folded into Q columns.
    qkv = (jnp.dot(h, wqkv_ref[0], preferred_element_type=f32)
           + bqkv_ref[0]).astype(bf16)           # (B*L, 3D)

    # Causal additive mask generated in-kernel (Python-float literals only).
    rows = jax.lax.broadcasted_iota(jnp.int32, (L, L), 0)
    cols = jax.lax.broadcasted_iota(jnp.int32, (L, L), 1)
    mask = jnp.where(cols > rows, -1e30, 0.0).astype(f32)

    ctx_heads = []
    for hh in range(H):                          # H is small & static (CLIP)
        q = qkv[:, hh * hd:(hh + 1) * hd].reshape(B, L, hd)
        k = qkv[:, D + hh * hd:D + (hh + 1) * hd].reshape(B, L, hd)
        v = qkv[:, 2 * D + hh * hd:2 * D + (hh + 1) * hd].reshape(B, L, hd)

        s = jnp.einsum('bld,bmd->blm', q, k,
                       preferred_element_type=f32) + mask[None]
        s = s - jnp.max(s, axis=-1, keepdims=True)
        e = jnp.exp(s)
        p = e * pl.reciprocal(jnp.sum(e, axis=-1, keepdims=True), approx=True)
        ctx = jnp.einsum('blm,bmd->bld', p.astype(bf16), v,
                         preferred_element_type=f32)          # (B, L, hd) f32
        ctx_heads.append(ctx)

    ctx_all = jnp.concatenate(ctx_heads, axis=-1)             # (B, L, D) f32
    ctx_all = ctx_all.reshape(B * L, D).astype(bf16)
    # Single full-K output projection (no per-head matmuls, no cross-head sum).
    att = jnp.dot(ctx_all, wo_ref[0], preferred_element_type=f32) + bo_ref[0]
    x1 = xf + att                                              # (B*L, D) f32

    # ---- MLP branch (pre-LN) ----
    h2 = _layernorm(x1, ln2_g[0], ln2_b[0]).astype(bf16)
    f = jnp.dot(h2, wfc_ref[0], preferred_element_type=f32) + bfc_ref[0]
    f = _quick_gelu(f)                                         # f32
    m = jnp.dot(f.astype(bf16), wpr_ref[0],
                preferred_element_type=f32) + bpr_ref[0]

    o_ref[...] = (x1 + m).reshape(B, L, D)


def ln_dual_proj_kernel(x_ref, g_ref, b_ref, pvw_ref, o_ref):
    """LayerNorm + fused (embed ++ scalar-weight) projection on a row tile."""
    h = _layernorm(x_ref[...], g_ref[...], b_ref[...])
    o_ref[...] = jnp.dot(h.astype(jnp.bfloat16), pvw_ref[...],
                         preferred_element_type=jnp.float32)
    # weight_act is nn.Identity() by default -> nothing more to do.


def patch_embed_kernel(a_ref, w_ref, b_ref, o_ref):
    """o = a @ w + b on a row tile of flattened patches (patch-embed conv)."""
    o_ref[...] = (jnp.dot(a_ref[...].astype(jnp.bfloat16), w_ref[...],
                          preferred_element_type=jnp.float32) + b_ref[...])


# ----------------------------------------------------------------------------
# pallas_call wrappers
# ----------------------------------------------------------------------------
def _stacked_spec(arr):
    """Block = one layer slice of a (num_layers, ...) stacked weight array."""
    nd = arr.ndim
    return pl.BlockSpec((1,) + arr.shape[1:],
                        lambda l, _nd=nd: (l,) + (0,) * (_nd - 1))


def run_transformer(x, tp, num_heads):
    """All transformer layers in one pallas_call; grid = (num_layers,)."""
    B, L, D = x.shape
    num_layers = tp['wqkv'].shape[0]
    weights = (tp['ln1_g'], tp['ln1_b'], tp['wqkv'], tp['bqkv'],
               tp['w_out'], tp['b_out'], tp['ln2_g'], tp['ln2_b'],
               tp['w_fc'], tp['b_fc'], tp['w_proj'], tp['b_proj'])
    in_specs = [pl.BlockSpec((B, L, D), lambda l: (0, 0, 0))]
    in_specs += [_stacked_spec(w) for w in weights]
    return pl.pallas_call(
        functools.partial(transformer_layer_kernel, num_heads=num_heads),
        out_shape=jax.ShapeDtypeStruct((B, L, D), jnp.float32),
        grid=(num_layers,),
        in_specs=in_specs,
        out_specs=pl.BlockSpec((B, L, D), lambda l: (0, 0, 0)),
        compiler_params=pltpu.CompilerParams(
            # Sequential dependence across layers via the resident output
            # block -> the layer axis must be "arbitrary".
            dimension_semantics=("arbitrary",),
            vmem_limit_bytes=VMEM_LIMIT_BYTES),
    )(x, *weights)


def run_ln_dual_proj(x, g, b, pvw, embed_dim):
    """LayerNorm + fused dual projection, tiled over rows (parallel axis)."""
    B, L, D = x.shape
    M = B * L
    Np = pvw.shape[1]
    tm = M if M <= 512 else 512
    out = pl.pallas_call(
        ln_dual_proj_kernel,
        out_shape=jax.ShapeDtypeStruct((M, Np), jnp.float32),
        grid=(pl.cdiv(M, tm),),
        in_specs=[pl.BlockSpec((tm, D), lambda i: (i, 0)),
                  pl.BlockSpec((1, D), lambda i: (0, 0)),
                  pl.BlockSpec((1, D), lambda i: (0, 0)),
                  pl.BlockSpec((D, Np), lambda i: (0, 0))],
        out_specs=pl.BlockSpec((tm, Np), lambda i: (i, 0)),
        compiler_params=pltpu.CompilerParams(
            dimension_semantics=("parallel",),
            vmem_limit_bytes=VMEM_LIMIT_BYTES),
    )(x.reshape(M, D), g, b, pvw)
    out = out.reshape(B, L, Np)
    return out[..., :embed_dim], out[..., embed_dim:embed_dim + 1]


def run_patch_embed(patches, w, b):
    """Patch-embed matmul, tiled over rows (parallel axis)."""
    B, P, K = patches.shape
    M = B * P
    N = w.shape[1]
    tm = M if M <= 512 else 512
    out = pl.pallas_call(
        patch_embed_kernel,
        out_shape=jax.ShapeDtypeStruct((M, N), jnp.float32),
        grid=(pl.cdiv(M, tm),),
        in_specs=[pl.BlockSpec((tm, K), lambda i: (i, 0)),
                  pl.BlockSpec((K, N), lambda i: (0, 0)),
                  pl.BlockSpec((1, N), lambda i: (0, 0))],
        out_specs=pl.BlockSpec((tm, N), lambda i: (i, 0)),
        compiler_params=pltpu.CompilerParams(
            dimension_semantics=("parallel",),
            vmem_limit_bytes=VMEM_LIMIT_BYTES),
    )(patches.reshape(M, K), w, b)
    return out.reshape(B, P, N)


# ----------------------------------------------------------------------------
# Glue (plain JAX)
# ----------------------------------------------------------------------------
def im2col(image, ps):
    """NCHW image -> (B, num_patches, C*ps*ps) row-major patch grid."""
    B, C, H, W = image.shape
    gh, gw = H // ps, W // ps
    x = image.reshape(B, C, gh, ps, gw, ps)
    x = x.transpose(0, 2, 4, 1, 3, 5)               # (B, gh, gw, C, ps, ps)
    return x.reshape(B, gh * gw, C * ps * ps)


def clip_wpse_two_proj_forward(params, image, text):
    # ---- text path (encode_text of CLIP_WPSE_two_proj) ----
    # token-embedding gather + positional add = glue (no clean Pallas gather)
    x = params['token_embedding'][text] + params['positional_embedding'][None]
    x = run_transformer(x, params['transformer'], params['num_heads'])
    text_embed, text_weight = run_ln_dual_proj(
        x, params['ln_final_g'], params['ln_final_b'],
        params['text_pvw'], params['embed_dim'])

    # ---- image path (encode_image of CLIP_WPSE_two_proj) ----
    # TODO(synk): the `visual` backbone is an injected module in the PyTorch
    # code; here it is a minimal ViT-style stub: forward_features = patch-embed
    # conv, fc_norm = LayerNorm, head = Identity.
    patches = im2col(image, params['patch_size'])
    tokens = run_patch_embed(patches, params['patch_w'], params['patch_b'])
    image_embed, image_weight = run_ln_dual_proj(
        tokens, params['fc_norm_g'], params['fc_norm_b'],
        params['image_pvw'], params['embed_dim'])

    logit_scale = jnp.exp(params['logit_scale'])     # LogitScaleExp activation
    return {'image_embed': image_embed,
            'image_weight': image_weight,
            'text_embed': text_embed,
            'text_weight': text_weight,
            'logit_scale': logit_scale}


# ----------------------------------------------------------------------------
# Deterministic parameter construction (mirrors initialize_parameters())
# ----------------------------------------------------------------------------
def _fuse_pad_proj(pv, pw):
    """Concat the scalar-weight column onto the embed projection; pad to 128."""
    fused = jnp.concatenate([pv, pw], axis=1)        # (D, E+1)
    n = fused.shape[1]
    npad = ((n + 127) // 128) * 128
    fused = jnp.pad(fused, ((0, 0), (0, npad - n)))
    return fused.astype(jnp.bfloat16)


def init_params(key, *, embed_dim, vision_width, context_length, vocab_size,
                transformer_width, transformer_heads, transformer_layers,
                image_channels, patch_size):
    keys = iter(jax.random.split(key, 4 * transformer_layers + 8))

    def nrm(shape, std):
        return std * jax.random.normal(next(keys), shape, jnp.float32)

    D = transformer_width
    H = transformer_heads
    hd = D // H
    NL = transformer_layers
    f32, bf16 = jnp.float32, jnp.bfloat16
    proj_std = D ** -0.5 * (2 * NL) ** -0.5
    attn_std = D ** -0.5
    fc_std = (2 * D) ** -0.5

    wqkv_l, wo_l, wfc_l, wpr_l = [], [], [], []
    for _ in range(NL):
        # torch layouts: in_proj_weight (3D, D), out_proj.weight (D, D),
        # c_fc.weight (4D, D), c_proj.weight (D, 4D). Transposed for x @ W and
        # the 1/sqrt(hd) attention scale is folded into the Q columns.
        in_w = nrm((3 * D, D), attn_std)
        w_q = in_w[:D].T * (hd ** -0.5)
        w_k = in_w[D:2 * D].T
        w_v = in_w[2 * D:].T
        wqkv_l.append(jnp.concatenate([w_q, w_k, w_v], axis=1))   # (D, 3D)
        wo_l.append(nrm((D, D), proj_std).T)                      # (D, D)
        wfc_l.append(nrm((4 * D, D), fc_std).T)                   # (D, 4D)
        wpr_l.append(nrm((D, 4 * D), proj_std).T)                 # (4D, D)

    transformer = dict(
        ln1_g=jnp.ones((NL, 1, D), f32), ln1_b=jnp.zeros((NL, 1, D), f32),
        wqkv=jnp.stack(wqkv_l).astype(bf16),                      # (NL, D, 3D)
        bqkv=jnp.zeros((NL, 1, 3 * D), f32),
        w_out=jnp.stack(wo_l).astype(bf16),                       # (NL, D, D)
        b_out=jnp.zeros((NL, 1, D), f32),
        ln2_g=jnp.ones((NL, 1, D), f32), ln2_b=jnp.zeros((NL, 1, D), f32),
        w_fc=jnp.stack(wfc_l).astype(bf16),                       # (NL, D, 4D)
        b_fc=jnp.zeros((NL, 1, 4 * D), f32),
        w_proj=jnp.stack(wpr_l).astype(bf16),                     # (NL, 4D, D)
        b_proj=jnp.zeros((NL, 1, D), f32),
    )

    k_patch = image_channels * patch_size * patch_size
    return dict(
        num_heads=H,
        patch_size=patch_size,
        embed_dim=embed_dim,
        token_embedding=nrm((vocab_size, D), 0.02),
        positional_embedding=nrm((context_length, D), 0.01),
        transformer=transformer,
        ln_final_g=jnp.ones((1, D), f32),
        ln_final_b=jnp.zeros((1, D), f32),
        # fused [text_projection | text_weight_proj], zero-padded to 128 lanes
        text_pvw=_fuse_pad_proj(nrm((D, embed_dim), D ** -0.5),
                                nrm((D, 1), D ** -0.5)),
        # visual (ViT patch-embed stub) params
        patch_w=nrm((vision_width, k_patch), k_patch ** -0.5).T.astype(bf16),
        patch_b=jnp.zeros((1, vision_width), f32),
        fc_norm_g=jnp.ones((1, vision_width), f32),
        fc_norm_b=jnp.zeros((1, vision_width), f32),
        image_pvw=_fuse_pad_proj(
            nrm((vision_width, embed_dim), vision_width ** -0.5),
            nrm((vision_width, 1), vision_width ** -0.5)),
        logit_scale=jnp.log(jnp.asarray(1.0 / 0.07, f32)),  # init 'scale' 1/0.07
    )


# ----------------------------------------------------------------------------
if __name__ == "__main__":
    B = 2
    C, Himg, Wimg = 3, 16, 16
    patch = 8
    vocab = 64
    context_length = 8
    transformer_width = 32
    heads = 4
    layers = 2
    embed_dim = 32
    vision_width = 32

    key = jax.random.PRNGKey(0)
    kp, ki, kt = jax.random.split(key, 3)
    params = init_params(kp,
                         embed_dim=embed_dim,
                         vision_width=vision_width,
                         context_length=context_length,
                         vocab_size=vocab,
                         transformer_width=transformer_width,
                         transformer_heads=heads,
                         transformer_layers=layers,
                         image_channels=C,
                         patch_size=patch)

    image = jax.random.normal(ki, (B, C, Himg, Wimg), jnp.float32)
    text = jax.random.randint(kt, (B, context_length), 0, vocab)

    out = clip_wpse_two_proj_forward(params, image, text)
    out = jax.block_until_ready(out)

    num_patches = (Himg // patch) * (Wimg // patch)
    assert out['image_embed'].shape == (B, num_patches, embed_dim)
    assert out['image_weight'].shape == (B, num_patches, 1)
    assert out['text_embed'].shape == (B, context_length, embed_dim)
    assert out['text_weight'].shape == (B, context_length, 1)
    assert out['logit_scale'].shape == ()
    print("KERNEL_OK")
</pallas_src>

<mosaic_0001>
module attributes {stable_mosaic.version = 11 : i64} {
  func.func @transformer_layer_kernel(%arg0: i32, %arg1: memref<2x8x32xf32, #tpu.memory_space<vmem>>, %arg2: memref<1x1x32xf32, #tpu.memory_space<vmem>>, %arg3: memref<1x1x32xf32, #tpu.memory_space<vmem>>, %arg4: memref<1x32x96xbf16, #tpu.memory_space<vmem>>, %arg5: memref<1x1x96xf32, #tpu.memory_space<vmem>>, %arg6: memref<1x32x32xbf16, #tpu.memory_space<vmem>>, %arg7: memref<1x1x32xf32, #tpu.memory_space<vmem>>, %arg8: memref<1x1x32xf32, #tpu.memory_space<vmem>>, %arg9: memref<1x1x32xf32, #tpu.memory_space<vmem>>, %arg10: memref<1x32x128xbf16, #tpu.memory_space<vmem>>, %arg11: memref<1x1x128xf32, #tpu.memory_space<vmem>>, %arg12: memref<1x128x32xbf16, #tpu.memory_space<vmem>>, %arg13: memref<1x1x32xf32, #tpu.memory_space<vmem>>, %arg14: memref<2x8x32xf32, #tpu.memory_space<vmem>>) attributes {dimension_semantics = [#tpu.dimension_semantics<arbitrary>], iteration_bounds = array<i64: 2>, scalar_prefetch = 0 : i64, scratch_operands = 0 : i64, tpu.core_type = #tpu.core_type<tc>, window_params = [{pipeline_mode = #tpu.pipeline_mode<synchronous>, transform_indices = @transform_0, window_bounds = array<i64: 2, 8, 32>}, {transform_indices = @transform_1, window_bounds = array<i64: 1, 1, 32>}, {transform_indices = @transform_2, window_bounds = array<i64: 1, 1, 32>}, {transform_indices = @transform_3, window_bounds = array<i64: 1, 32, 96>}, {transform_indices = @transform_4, window_bounds = array<i64: 1, 1, 96>}, {transform_indices = @transform_5, window_bounds = array<i64: 1, 32, 32>}, {transform_indices = @transform_6, window_bounds = array<i64: 1, 1, 32>}, {transform_indices = @transform_7, window_bounds = array<i64: 1, 1, 32>}, {transform_indices = @transform_8, window_bounds = array<i64: 1, 1, 32>}, {transform_indices = @transform_9, window_bounds = array<i64: 1, 32, 128>}, {transform_indices = @transform_10, window_bounds = array<i64: 1, 1, 128>}, {transform_indices = @transform_11, window_bounds = array<i64: 1, 128, 32>}, {transform_indices = @transform_12, window_bounds = array<i64: 1, 1, 32>}, {pipeline_mode = #tpu.pipeline_mode<synchronous>, transform_indices = @transform_13, window_bounds = array<i64: 2, 8, 32>}]} {
    %c0_i32 = arith.constant 0 : i32
    %0 = arith.cmpi eq, %arg0, %c0_i32 : i32
    %1 = arith.extui %0 : i1 to i32
    %c0_i32_0 = arith.constant 0 : i32
    %2 = arith.cmpi ne, %1, %c0_i32_0 : i32
    scf.if %2 {
      %c0_76 = arith.constant 0 : index
      %c0_77 = arith.constant 0 : index
      %c0_78 = arith.constant 0 : index
      %194 = vector.load %arg1[%c0_76, %c0_77, %c0_78] : memref<2x8x32xf32, #tpu.memory_space<vmem>>, vector<2x8x32xf32>
      %c0_79 = arith.constant 0 : index
      %c0_80 = arith.constant 0 : index
      %c0_81 = arith.constant 0 : index
      %195 = vector.load %arg14[%c0_79, %c0_80, %c0_81] : memref<2x8x32xf32, #tpu.memory_space<vmem>>, vector<2x8x32xf32>
      tpu.vector_store %arg14[%c0_79, %c0_80, %c0_81], %194 {strides = array<i32>} : memref<2x8x32xf32, #tpu.memory_space<vmem>>, vector<2x8x32xf32>,
    } else {
    }
    %c0 = arith.constant 0 : index
    %c0_1 = arith.constant 0 : index
    %c0_2 = arith.constant 0 : index
    %3 = vector.load %arg14[%c0, %c0_1, %c0_2] : memref<2x8x32xf32, #tpu.memory_space<vmem>>, vector<2x8x32xf32>
    %4 = vector.shape_cast %3 : vector<2x8x32xf32> to vector<16x32xf32>
    %c0_3 = arith.constant 0 : index
    %c0_4 = arith.constant 0 : index
    %c0_5 = arith.constant 0 : index
    %5 = vector.load %arg2[%c0_3, %c0_4, %c0_5] : memref<1x1x32xf32, #tpu.memory_space<vmem>>, vector<1x1x32xf32>
    %6 = vector.shape_cast %5 : vector<1x1x32xf32> to vector<1x32xf32>
    %c0_6 = arith.constant 0 : index
    %c0_7 = arith.constant 0 : index
    %c0_8 = arith.constant 0 : index
    %7 = vector.load %arg3[%c0_6, %c0_7, %c0_8] : memref<1x1x32xf32, #tpu.memory_space<vmem>>, vector<1x1x32xf32>
    %8 = vector.shape_cast %7 : vector<1x1x32xf32> to vector<1x32xf32>
    %cst = arith.constant dense<0.000000e+00> : vector<16xf32>
    %9 = vector.multi_reduction <add>, %4, %cst [1] : vector<16x32xf32> to vector<16xf32>
    %10 = vector.shape_cast %9 : vector<16xf32> to vector<16x1xf32>
    %cst_9 = arith.constant 3.200000e+01 : f32
    %11 = vector.broadcast %cst_9 : f32 to vector<16x1xf32>
    %12 = arith.divf %10, %11 : vector<16x1xf32>
    %13 = vector.broadcast %12 : vector<16x1xf32> to vector<16x32xf32>
    %14 = arith.subf %4, %13 : vector<16x32xf32>
    %15 = arith.mulf %14, %14 : vector<16x32xf32>
    %cst_10 = arith.constant dense<0.000000e+00> : vector<16xf32>
    %16 = vector.multi_reduction <add>, %15, %cst_10 [1] : vector<16x32xf32> to vector<16xf32>
    %17 = vector.shape_cast %16 : vector<16xf32> to vector<16x1xf32>
    %cst_11 = arith.constant 3.200000e+01 : f32
    %18 = vector.broadcast %cst_11 : f32 to vector<16x1xf32>
    %19 = arith.divf %17, %18 : vector<16x1xf32>
    %cst_12 = arith.constant 9.99999974E-6 : f32
    %20 = vector.broadcast %cst_12 : f32 to vector<16x1xf32>
    %21 = arith.addf %19, %20 : vector<16x1xf32>
    %22 = math.rsqrt %21 : vector<16x1xf32>
    %23 = vector.broadcast %22 : vector<16x1xf32> to vector<16x32xf32>
    %24 = arith.mulf %14, %23 : vector<16x32xf32>
    %25 = vector.broadcast %6 : vector<1x32xf32> to vector<16x32xf32>
    %26 = arith.mulf %24, %25 : vector<16x32xf32>
    %27 = vector.broadcast %8 : vector<1x32xf32> to vector<16x32xf32>
    %28 = arith.addf %26, %27 : vector<16x32xf32>
    %29 = arith.truncf %28 : vector<16x32xf32> to vector<16x32xbf16>
    %c0_13 = arith.constant 0 : index
    %c0_14 = arith.constant 0 : index
    %c0_15 = arith.constant 0 : index
    %30 = vector.load %arg4[%c0_13, %c0_14, %c0_15] : memref<1x32x96xbf16, #tpu.memory_space<vmem>>, vector<1x32x96xbf16>
    %31 = vector.shape_cast %30 : vector<1x32x96xbf16> to vector<32x96xbf16>
    %cst_16 = arith.constant dense<0.000000e+00> : vector<16x96xf32>
    %32 = tpu.matmul %29, %31, %cst_16 {dimension_numbers = #tpu.dot_dimension_numbers<[1], [0], [0], [1], [0, 0, 1, 1], [], []>} : vector<16x32xbf16>, vector<32x96xbf16>, vector<16x96xf32> -> vector<16x96xf32>
    %c0_17 = arith.constant 0 : index
    %c0_18 = arith.constant 0 : index
    %c0_19 = arith.constant 0 : index
    %33 = vector.load %arg5[%c0_17, %c0_18, %c0_19] : memref<1x1x96xf32, #tpu.memory_space<vmem>>, vector<1x1x96xf32>
    %34 = vector.shape_cast %33 : vector<1x1x96xf32> to vector<1x96xf32>
    %35 = vector.broadcast %34 : vector<1x96xf32> to vector<16x96xf32>
    %36 = arith.addf %32, %35 : vector<16x96xf32>
    %37 = arith.truncf %36 : vector<16x96xf32> to vector<16x96xbf16>
    %38 = tpu.iota {dimensions = array<i32: 0>} : vector<8x8xi32>
    %39 = tpu.iota {dimensions = array<i32: 1>} : vector<8x8xi32>
    %40 = arith.cmpi sgt, %39, %38 : vector<8x8xi32>
    %cst_20 = arith.constant -1.000000e+30 : f32
    %cst_21 = arith.constant 0.000000e+00 : f32
    %41 = vector.broadcast %cst_20 : f32 to vector<8x8xf32>
    %42 = vector.broadcast %cst_21 : f32 to vector<8x8xf32>
    %43 = arith.select %40, %41, %42 : vector<8x8xi1>, vector<8x8xf32>
    %44 = vector.extract_strided_slice %37 {offsets = [0, 0], sizes = [16, 8], strides = [1, 1]} : vector<16x96xbf16> to vector<16x8xbf16>
    %45 = vector.shape_cast %44 : vector<16x8xbf16> to vector<2x8x8xbf16>
    %46 = vector.extract_strided_slice %37 {offsets = [0, 32], sizes = [16, 8], strides = [1, 1]} : vector<16x96xbf16> to vector<16x8xbf16>
    %47 = vector.shape_cast %46 : vector<16x8xbf16> to vector<2x8x8xbf16>
    %48 = vector.extract_strided_slice %37 {offsets = [0, 64], sizes = [16, 8], strides = [1, 1]} : vector<16x96xbf16> to vector<16x8xbf16>
    %49 = vector.shape_cast %48 : vector<16x8xbf16> to vector<2x8x8xbf16>
    "tpu.trace_start"() <{level = 10 : i32, message = "bld,bmd->blm"}> : () -> ()
    %cst_22 = arith.constant dense<0.000000e+00> : vector<2x8x8xf32>
    %50 = tpu.matmul %45, %47, %cst_22 {dimension_numbers = #tpu.dot_dimension_numbers<[2], [2], [1], [1], [0, 0, 0, 1, 1, 1], [0], [0]>} : vector<2x8x8xbf16>, vector<2x8x8xbf16>, vector<2x8x8xf32> -> vector<2x8x8xf32>
    "tpu.trace_stop"() : () -> ()
    %51 = vector.shape_cast %43 : vector<8x8xf32> to vector<1x8x8xf32>
    %52 = vector.broadcast %51 : vector<1x8x8xf32> to vector<2x8x8xf32>
    %53 = arith.addf %50, %52 : vector<2x8x8xf32>
    %cst_23 = arith.constant dense<0xFF800000> : vector<2x8xf32>
    %54 = vector.multi_reduction <maximumf>, %53, %cst_23 [2] : vector<2x8x8xf32> to vector<2x8xf32>
    %55 = vector.shape_cast %54 : vector<2x8xf32> to vector<2x8x1xf32>
    %56 = vector.broadcast %55 : vector<2x8x1xf32> to vector<2x8x8xf32>
    %57 = arith.subf %53, %56 : vector<2x8x8xf32>
    %58 = math.exp %57 : vector<2x8x8xf32>
    %cst_24 = arith.constant dense<0.000000e+00> : vector<2x8xf32>
    %59 = vector.multi_reduction <add>, %58, %cst_24 [2] : vector<2x8x8xf32> to vector<2x8xf32>
    %60 = vector.shape_cast %59 : vector<2x8xf32> to vector<2x8x1xf32>
    %61 = tpu.reciprocal %60 {approx = true} : vector<2x8x1xf32> -> vector<2x8x1xf32>
    %62 = vector.broadcast %61 : vector<2x8x1xf32> to vector<2x8x8xf32>
    %63 = arith.mulf %58, %62 : vector<2x8x8xf32>
    %64 = arith.truncf %63 : vector<2x8x8xf32> to vector<2x8x8xbf16>
    "tpu.trace_start"() <{level = 10 : i32, message = "blm,bmd->bld"}> : () -> ()
    %cst_25 = arith.constant dense<0.000000e+00> : vector<2x8x8xf32>
    %65 = tpu.matmul %64, %49, %cst_25 {dimension_numbers = #tpu.dot_dimension_numbers<[2], [1], [1], [2], [0, 0, 0, 1, 1, 2], [0], [0]>} : vector<2x8x8xbf16>, vector<2x8x8xbf16>, vector<2x8x8xf32> -> vector<2x8x8xf32>
    "tpu.trace_stop"() : () -> ()
    %66 = vector.extract_strided_slice %37 {offsets = [0, 8], sizes = [16, 8], strides = [1, 1]} : vector<16x96xbf16> to vector<16x8xbf16>
    %67 = vector.shape_cast %66 : vector<16x8xbf16> to vector<2x8x8xbf16>
    %68 = vector.extract_strided_slice %37 {offsets = [0, 40], sizes = [16, 8], strides = [1, 1]} : vector<16x96xbf16> to vector<16x8xbf16>
    %69 = vector.shape_cast %68 : vector<16x8xbf16> to vector<2x8x8xbf16>
    %70 = vector.extract_strided_slice %37 {offsets = [0, 72], sizes = [16, 8], strides = [1, 1]} : vector<16x96xbf16> to vector<16x8xbf16>
    %71 = vector.shape_cast %70 : vector<16x8xbf16> to vector<2x8x8xbf16>
    "tpu.trace_start"() <{level = 10 : i32, message = "bld,bmd->blm"}> : () -> ()
    %cst_26 = arith.constant dense<0.000000e+00> : vector<2x8x8xf32>
    %72 = tpu.matmul %67, %69, %cst_26 {dimension_numbers = #tpu.dot_dimension_numbers<[2], [2], [1], [1], [0, 0, 0, 1, 1, 1], [0], [0]>} : vector<2x8x8xbf16>, vector<2x8x8xbf16>, vector<2x8x8xf32> -> vector<2x8x8xf32>
    "tpu.trace_stop"() : () -> ()
    %73 = vector.shape_cast %43 : vector<8x8xf32> to vector<1x8x8xf32>
    %74 = vector.broadcast %73 : vector<1x8x8xf32> to vector<2x8x8xf32>
    %75 = arith.addf %72, %74 : vector<2x8x8xf32>
    %cst_27 = arith.constant dense<0xFF800000> : vector<2x8xf32>
    %76 = vector.multi_reduction <maximumf>, %75, %cst_27 [2] : vector<2x8x8xf32> to vector<2x8xf32>
    %77 = vector.shape_cast %76 : vector<2x8xf32> to vector<2x8x1xf32>
    %78 = vector.broadcast %77 : vector<2x8x1xf32> to vector<2x8x8xf32>
    %79 = arith.subf %75, %78 : vector<2x8x8xf32>
    %80 = math.exp %79 : vector<2x8x8xf32>
    %cst_28 = arith.constant dense<0.000000e+00> : vector<2x8xf32>
    %81 = vector.multi_reduction <add>, %80, %cst_28 [2] : vector<2x8x8xf32> to vector<2x8xf32>
    %82 = vector.shape_cast %81 : vector<2x8xf32> to vector<2x8x1xf32>
    %83 = tpu.reciprocal %82 {approx = true} : vector<2x8x1xf32> -> vector<2x8x1xf32>
    %84 = vector.broadcast %83 : vector<2x8x1xf32> to vector<2x8x8xf32>
    %85 = arith.mulf %80, %84 : vector<2x8x8xf32>
    %86 = arith.truncf %85 : vector<2x8x8xf32> to vector<2x8x8xbf16>
    "tpu.trace_start"() <{level = 10 : i32, message = "blm,bmd->bld"}> : () -> ()
    %cst_29 = arith.constant dense<0.000000e+00> : vector<2x8x8xf32>
    %87 = tpu.matmul %86, %71, %cst_29 {dimension_numbers = #tpu.dot_dimension_numbers<[2], [1], [1], [2], [0, 0, 0, 1, 1, 2], [0], [0]>} : vector<2x8x8xbf16>, vector<2x8x8xbf16>, vector<2x8x8xf32> -> vector<2x8x8xf32>
    "tpu.trace_stop"() : () -> ()
    %88 = vector.extract_strided_slice %37 {offsets = [0, 16], sizes = [16, 8], strides = [1, 1]} : vector<16x96xbf16> to vector<16x8xbf16>
    %89 = vector.shape_cast %88 : vector<16x8xbf16> to vector<2x8x8xbf16>
    %90 = vector.extract_strided_slice %37 {offsets = [0, 48], sizes = [16, 8], strides = [1, 1]} : vector<16x96xbf16> to vector<16x8xbf16>
    %91 = vector.shape_cast %90 : vector<16x8xbf16> to vector<2x8x8xbf16>
    %92 = vector.extract_strided_slice %37 {offsets = [0, 80], sizes = [16, 8], strides = [1, 1]} : vector<16x96xbf16> to vector<16x8xbf16>
    %93 = vector.shape_cast %92 : vector<16x8xbf16> to vector<2x8x8xbf16>
    "tpu.trace_start"() <{level = 10 : i32, message = "bld,bmd->blm"}> : () -> ()
    %cst_30 = arith.constant dense<0.000000e+00> : vector<2x8x8xf32>
    %94 = tpu.matmul %89, %91, %cst_30 {dimension_numbers = #tpu.dot_dimension_numbers<[2], [2], [1], [1], [0, 0, 0, 1, 1, 1], [0], [0]>} : vector<2x8x8xbf16>, vector<2x8x8xbf16>, vector<2x8x8xf32> -> vector<2x8x8xf32>
    "tpu.trace_stop"() : () -> ()
    %95 = vector.shape_cast %43 : vector<8x8xf32> to vector<1x8x8xf32>
    %96 = vector.broadcast %95 : vector<1x8x8xf32> to vector<2x8x8xf32>
    %97 = arith.addf %94, %96 : vector<2x8x8xf32>
    %cst_31 = arith.constant dense<0xFF800000> : vector<2x8xf32>
    %98 = vector.multi_reduction <maximumf>, %97, %cst_31 [2] : vector<2x8x8xf32> to vector<2x8xf32>
    %99 = vector.shape_cast %98 : vector<2x8xf32> to vector<2x8x1xf32>
    %100 = vector.broadcast %99 : vector<2x8x1xf32> to vector<2x8x8xf32>
    %101 = arith.subf %97, %100 : vector<2x8x8xf32>
    %102 = math.exp %101 : vector<2x8x8xf32>
    %cst_32 = arith.constant dense<0.000000e+00> : vector<2x8xf32>
    %103 = vector.multi_reduction <add>, %102, %cst_32 [2] : vector<2x8x8xf32> to vector<2x8xf32>
    %104 = vector.shape_cast %103 : vector<2x8xf32> to vector<2x8x1xf32>
    %105 = tpu.reciprocal %104 {approx = true} : vector<2x8x1xf32> -> vector<2x8x1xf32>
    %106 = vector.broadcast %105 : vector<2x8x1xf32> to vector<2x8x8xf32>
    %107 = arith.mulf %102, %106 : vector<2x8x8xf32>
    %108 = arith.truncf %107 : vector<2x8x8xf32> to vector<2x8x8xbf16>
    "tpu.trace_start"() <{level = 10 : i32, message = "blm,bmd->bld"}> : () -> ()
    %cst_33 = arith.constant dense<0.000000e+00> : vector<2x8x8xf32>
    %109 = tpu.matmul %108, %93, %cst_33 {dimension_numbers = #tpu.dot_dimension_numbers<[2], [1], [1], [2], [0, 0, 0, 1, 1, 2], [0], [0]>} : vector<2x8x8xbf16>, vector<2x8x8xbf16>, vector<2x8x8xf32> -> vector<2x8x8xf32>
    "tpu.trace_stop"() : () -> ()
    %110 = vector.extract_strided_slice %37 {offsets = [0, 24], sizes = [16, 8], strides = [1, 1]} : vector<16x96xbf16> to vector<16x8xbf16>
    %111 = vector.shape_cast %110 : vector<16x8xbf16> to vector<2x8x8xbf16>
    %112 = vector.extract_strided_slice %37 {offsets = [0, 56], sizes = [16, 8], strides = [1, 1]} : vector<16x96xbf16> to vector<16x8xbf16>
    %113 = vector.shape_cast %112 : vector<16x8xbf16> to vector<2x8x8xbf16>
    %114 = vector.extract_strided_slice %37 {offsets = [0, 88], sizes = [16, 8], strides = [1, 1]} : vector<16x96xbf16> to vector<16x8xbf16>
    %115 = vector.shape_cast %114 : vector<16x8xbf16> to vector<2x8x8xbf16>
    "tpu.trace_start"() <{level = 10 : i32, message = "bld,bmd->blm"}> : () -> ()
    %cst_34 = arith.constant dense<0.000000e+00> : vector<2x8x8xf32>
    %116 = tpu.matmul %111, %113, %cst_34 {dimension_numbers = #tpu.dot_dimension_numbers<[2], [2], [1], [1], [0, 0, 0, 1, 1, 1], [0], [0]>} : vector<2x8x8xbf16>, vector<2x8x8xbf16>, vector<2x8x8xf32> -> vector<2x8x8xf32>
    "tpu.trace_stop"() : () -> ()
    %117 = vector.shape_cast %43 : vector<8x8xf32> to vector<1x8x8xf32>
    %118 = vector.broadcast %117 : vector<1x8x8xf32> to vector<2x8x8xf32>
    %119 = arith.addf %116, %118 : vector<2x8x8xf32>
    %cst_35 = arith.constant dense<0xFF800000> : vector<2x8xf32>
    %120 = vector.multi_reduction <maximumf>, %119, %cst_35 [2] : vector<2x8x8xf32> to vector<2x8xf32>
    %121 = vector.shape_cast %120 : vector<2x8xf32> to vector<2x8x1xf32>
    %122 = vector.broadcast %121 : vector<2x8x1xf32> to vector<2x8x8xf32>
    %123 = arith.subf %119, %122 : vector<2x8x8xf32>
    %124 = math.exp %123 : vector<2x8x8xf32>
    %cst_36 = arith.constant dense<0.000000e+00> : vector<2x8xf32>
    %125 = vector.multi_reduction <add>, %124, %cst_36 [2] : vector<2x8x8xf32> to vector<2x8xf32>
    %126 = vector.shape_cast %125 : vector<2x8xf32> to vector<2x8x1xf32>
    %127 = tpu.reciprocal %126 {approx = true} : vector<2x8x1xf32> -> vector<2x8x1xf32>
    %128 = vector.broadcast %127 : vector<2x8x1xf32> to vector<2x8x8xf32>
    %129 = arith.mulf %124, %128 : vector<2x8x8xf32>
    %130 = arith.truncf %129 : vector<2x8x8xf32> to vector<2x8x8xbf16>
    "tpu.trace_start"() <{level = 10 : i32, message = "blm,bmd->bld"}> : () -> ()
    %cst_37 = arith.constant dense<0.000000e+00> : vector<2x8x8xf32>
    %131 = tpu.matmul %130, %115, %cst_37 {dimension_numbers = #tpu.dot_dimension_numbers<[2], [1], [1], [2], [0, 0, 0, 1, 1, 2], [0], [0]>} : vector<2x8x8xbf16>, vector<2x8x8xbf16>, vector<2x8x8xf32> -> vector<2x8x8xf32>
    "tpu.trace_stop"() : () -> ()
    %132 = tpu.concatenate %65, %87, %109, %131 in 2 : vector<2x8x8xf32>, vector<2x8x8xf32>, vector<2x8x8xf32>, vector<2x8x8xf32> -> vector<2x8x32xf32>
    %133 = vector.shape_cast %132 : vector<2x8x32xf32> to vector<16x32xf32>
    %134 = arith.truncf %133 : vector<16x32xf32> to vector<16x32xbf16>
    %c0_38 = arith.constant 0 : index
    %c0_39 = arith.constant 0 : index
    %c0_40 = arith.constant 0 : index
    %135 = vector.load %arg6[%c0_38, %c0_39, %c0_40] : memref<1x32x32xbf16, #tpu.memory_space<vmem>>, vector<1x32x32xbf16>
    %136 = vector.shape_cast %135 : vector<1x32x32xbf16> to vector<32x32xbf16>
    %cst_41 = arith.constant dense<0.000000e+00> : vector<16x32xf32>
    %137 = tpu.matmul %134, %136, %cst_41 {dimension_numbers = #tpu.dot_dimension_numbers<[1], [0], [0], [1], [0, 0, 1, 1], [], []>} : vector<16x32xbf16>, vector<32x32xbf16>, vector<16x32xf32> -> vector<16x32xf32>
    %c0_42 = arith.constant 0 : index
    %c0_43 = arith.constant 0 : index
    %c0_44 = arith.constant 0 : index
    %138 = vector.load %arg7[%c0_42, %c0_43, %c0_44] : memref<1x1x32xf32, #tpu.memory_space<vmem>>, vector<1x1x32xf32>
    %139 = vector.shape_cast %138 : vector<1x1x32xf32> to vector<1x32xf32>
    %140 = vector.broadcast %139 : vector<1x32xf32> to vector<16x32xf32>
    %141 = arith.addf %137, %140 : vector<16x32xf32>
    %142 = arith.addf %4, %141 : vector<16x32xf32>
    %c0_45 = arith.constant 0 : index
    %c0_46 = arith.constant 0 : index
    %c0_47 = arith.constant 0 : index
    %143 = vector.load %arg8[%c0_45, %c0_46, %c0_47] : memref<1x1x32xf32, #tpu.memory_space<vmem>>, vector<1x1x32xf32>
    %144 = vector.shape_cast %143 : vector<1x1x32xf32> to vector<1x32xf32>
    %c0_48 = arith.constant 0 : index
    %c0_49 = arith.constant 0 : index
    %c0_50 = arith.constant 0 : index
    %145 = vector.load %arg9[%c0_48, %c0_49, %c0_50] : memref<1x1x32xf32, #tpu.memory_space<vmem>>, vector<1x1x32xf32>
    %146 = vector.shape_cast %145 : vector<1x1x32xf32> to vector<1x32xf32>
    %cst_51 = arith.constant dense<0.000000e+00> : vector<16xf32>
    %147 = vector.multi_reduction <add>, %142, %cst_51 [1] : vector<16x32xf32> to vector<16xf32>
    %148 = vector.shape_cast %147 : vector<16xf32> to vector<16x1xf32>
    %cst_52 = arith.constant 3.200000e+01 : f32
    %149 = vector.broadcast %cst_52 : f32 to vector<16x1xf32>
    %150 = arith.divf %148, %149 : vector<16x1xf32>
    %151 = vector.broadcast %150 : vector<16x1xf32> to vector<16x32xf32>
    %152 = arith.subf %142, %151 : vector<16x32xf32>
    %153 = arith.mulf %152, %152 : vector<16x32xf32>
    %cst_53 = arith.constant dense<0.000000e+00> : vector<16xf32>
    %154 = vector.multi_reduction <add>, %153, %cst_53 [1] : vector<16x32xf32> to vector<16xf32>
    %155 = vector.shape_cast %154 : vector<16xf32> to vector<16x1xf32>
    %cst_54 = arith.constant 3.200000e+01 : f32
    %156 = vector.broadcast %cst_54 : f32 to vector<16x1xf32>
    %157 = arith.divf %155, %156 : vector<16x1xf32>
    %cst_55 = arith.constant 9.99999974E-6 : f32
    %158 = vector.broadcast %cst_55 : f32 to vector<16x1xf32>
    %159 = arith.addf %157, %158 : vector<16x1xf32>
    %160 = math.rsqrt %159 : vector<16x1xf32>
    %161 = vector.broadcast %160 : vector<16x1xf32> to vector<16x32xf32>
    %162 = arith.mulf %152, %161 : vector<16x32xf32>
    %163 = vector.broadcast %144 : vector<1x32xf32> to vector<16x32xf32>
    %164 = arith.mulf %162, %163 : vector<16x32xf32>
    %165 = vector.broadcast %146 : vector<1x32xf32> to vector<16x32xf32>
    %166 = arith.addf %164, %165 : vector<16x32xf32>
    %167 = arith.truncf %166 : vector<16x32xf32> to vector<16x32xbf16>
    %c0_56 = arith.constant 0 : index
    %c0_57 = arith.constant 0 : index
    %c0_58 = arith.constant 0 : index
    %168 = vector.load %arg10[%c0_56, %c0_57, %c0_58] : memref<1x32x128xbf16, #tpu.memory_space<vmem>>, vector<1x32x128xbf16>
    %169 = vector.shape_cast %168 : vector<1x32x128xbf16> to vector<32x128xbf16>
    %cst_59 = arith.constant dense<0.000000e+00> : vector<16x128xf32>
    %170 = tpu.matmul %167, %169, %cst_59 {dimension_numbers = #tpu.dot_dimension_numbers<[1], [0], [0], [1], [0, 0, 1, 1], [], []>} : vector<16x32xbf16>, vector<32x128xbf16>, vector<16x128xf32> -> vector<16x128xf32>
    %c0_60 = arith.constant 0 : index
    %c0_61 = arith.constant 0 : index
    %c0_62 = arith.constant 0 : index
    %171 = vector.load %arg11[%c0_60, %c0_61, %c0_62] : memref<1x1x128xf32, #tpu.memory_space<vmem>>, vector<1x1x128xf32>
    %172 = vector.shape_cast %171 : vector<1x1x128xf32> to vector<1x128xf32>
    %173 = vector.broadcast %172 : vector<1x128xf32> to vector<16x128xf32>
    %174 = arith.addf %170, %173 : vector<16x128xf32>
    %cst_63 = arith.constant -1.702000e+00 : f32
    %175 = vector.broadcast %cst_63 : f32 to vector<16x128xf32>
    %176 = arith.mulf %175, %174 : vector<16x128xf32>
    %177 = math.exp %176 : vector<16x128xf32>
    %cst_64 = arith.constant 1.000000e+00 : f32
    %178 = vector.broadcast %cst_64 : f32 to vector<16x128xf32>
    %179 = arith.addf %178, %177 : vector<16x128xf32>
    %cst_65 = arith.constant 1.000000e+00 : f32
    %180 = vector.broadcast %cst_65 : f32 to vector<16x128xf32>
    %181 = arith.divf %180, %179 : vector<16x128xf32>
    %182 = arith.mulf %174, %181 : vector<16x128xf32>
    %183 = arith.truncf %182 : vector<16x128xf32> to vector<16x128xbf16>
    %c0_66 = arith.constant 0 : index
    %c0_67 = arith.constant 0 : index
    %c0_68 = arith.constant 0 : index
    %184 = vector.load %arg12[%c0_66, %c0_67, %c0_68] : memref<1x128x32xbf16, #tpu.memory_space<vmem>>, vector<1x128x32xbf16>
    %185 = vector.shape_cast %184 : vector<1x128x32xbf16> to vector<128x32xbf16>
    %cst_69 = arith.constant dense<0.000000e+00> : vector<16x32xf32>
    %186 = tpu.matmul %183, %185, %cst_69 {dimension_numbers = #tpu.dot_dimension_numbers<[1], [0], [0], [1], [0, 0, 1, 1], [], []>} : vector<16x128xbf16>, vector<128x32xbf16>, vector<16x32xf32> -> vector<16x32xf32>
    %c0_70 = arith.constant 0 : index
    %c0_71 = arith.constant 0 : index
    %c0_72 = arith.constant 0 : index
    %187 = vector.load %arg13[%c0_70, %c0_71, %c0_72] : memref<1x1x32xf32, #tpu.memory_space<vmem>>, vector<1x1x32xf32>
    %188 = vector.shape_cast %187 : vector<1x1x32xf32> to vector<1x32xf32>
    %189 = vector.broadcast %188 : vector<1x32xf32> to vector<16x32xf32>
    %190 = arith.addf %186, %189 : vector<16x32xf32>
    %191 = arith.addf %142, %190 : vector<16x32xf32>
    %192 = vector.shape_cast %191 : vector<16x32xf32> to vector<2x8x32xf32>
    %c0_73 = arith.constant 0 : index
    %c0_74 = arith.constant 0 : index
    %c0_75 = arith.constant 0 : index
    %193 = vector.load %arg14[%c0_73, %c0_74, %c0_75] : memref<2x8x32xf32, #tpu.memory_space<vmem>>, vector<2x8x32xf32>
    tpu.vector_store %arg14[%c0_73, %c0_74, %c0_75], %192 {strides = array<i32>} : memref<2x8x32xf32, #tpu.memory_space<vmem>>, vector<2x8x32xf32>,
    return
  }
  func.func @transform_0(%arg0: i32) -> (i32, i32, i32) {
    %c0_i32 = arith.constant 0 : i32
    %c0_i32_0 = arith.constant 0 : i32
    %c0_i32_1 = arith.constant 0 : i32
    %c0_i32_2 = arith.constant 0 : i32
    return %c0_i32, %c0_i32_0, %c0_i32_1 : i32, i32, i32
  }
  func.func @transform_1(%arg0: i32) -> (i32, i32, i32) {
    %c0_i32 = arith.constant 0 : i32
    %c0_i32_0 = arith.constant 0 : i32
    %c0_i32_1 = arith.constant 0 : i32
    return %arg0, %c0_i32, %c0_i32_0 : i32, i32, i32
  }
  func.func @transform_2(%arg0: i32) -> (i32, i32, i32) {
    %c0_i32 = arith.constant 0 : i32
    %c0_i32_0 = arith.constant 0 : i32
    %c0_i32_1 = arith.constant 0 : i32
    return %arg0, %c0_i32, %c0_i32_0 : i32, i32, i32
  }
  func.func @transform_3(%arg0: i32) -> (i32, i32, i32) {
    %c0_i32 = arith.constant 0 : i32
    %c0_i32_0 = arith.constant 0 : i32
    %c0_i32_1 = arith.constant 0 : i32
    return %arg0, %c0_i32, %c0_i32_0 : i32, i32, i32
  }
  func.func @transform_4(%arg0: i32) -> (i32, i32, i32) {
    %c0_i32 = arith.constant 0 : i32
    %c0_i32_0 = arith.constant 0 : i32
    %c0_i32_1 = arith.constant 0 : i32
    return %arg0, %c0_i32, %c0_i32_0 : i32, i32, i32
  }
  func.func @transform_5(%arg0: i32) -> (i32, i32, i32) {
    %c0_i32 = arith.constant 0 : i32
    %c0_i32_0 = arith.constant 0 : i32
    %c0_i32_1 = arith.constant 0 : i32
    return %arg0, %c0_i32, %c0_i32_0 : i32, i32, i32
  }
  func.func @transform_6(%arg0: i32) -> (i32, i32, i32) {
    %c0_i32 = arith.constant 0 : i32
    %c0_i32_0 = arith.constant 0 : i32
    %c0_i32_1 = arith.constant 0 : i32
    return %arg0, %c0_i32, %c0_i32_0 : i32, i32, i32
  }
  func.func @transform_7(%arg0: i32) -> (i32, i32, i32) {
    %c0_i32 = arith.constant 0 : i32
    %c0_i32_0 = arith.constant 0 : i32
    %c0_i32_1 = arith.constant 0 : i32
    return %arg0, %c0_i32, %c0_i32_0 : i32, i32, i32
  }
  func.func @transform_8(%arg0: i32) -> (i32, i32, i32) {
    %c0_i32 = arith.constant 0 : i32
    %c0_i32_0 = arith.constant 0 : i32
    %c0_i32_1 = arith.constant 0 : i32
    return %arg0, %c0_i32, %c0_i32_0 : i32, i32, i32
  }
  func.func @transform_9(%arg0: i32) -> (i32, i32, i32) {
    %c0_i32 = arith.constant 0 : i32
    %c0_i32_0 = arith.constant 0 : i32
    %c0_i32_1 = arith.constant 0 : i32
    return %arg0, %c0_i32, %c0_i32_0 : i32, i32, i32
  }
  func.func @transform_10(%arg0: i32) -> (i32, i32, i32) {
    %c0_i32 = arith.constant 0 : i32
    %c0_i32_0 = arith.constant 0 : i32
    %c0_i32_1 = arith.constant 0 : i32
    return %arg0, %c0_i32, %c0_i32_0 : i32, i32, i32
  }
  func.func @transform_11(%arg0: i32) -> (i32, i32, i32) {
    %c0_i32 = arith.constant 0 : i32
    %c0_i32_0 = arith.constant 0 : i32
    %c0_i32_1 = arith.constant 0 : i32
    return %arg0, %c0_i32, %c0_i32_0 : i32, i32, i32
  }
  func.func @transform_12(%arg0: i32) -> (i32, i32, i32) {
    %c0_i32 = arith.constant 0 : i32
    %c0_i32_0 = arith.constant 0 : i32
    %c0_i32_1 = arith.constant 0 : i32
    return %arg0, %c0_i32, %c0_i32_0 : i32, i32, i32
  }
  func.func @transform_13(%arg0: i32) -> (i32, i32, i32) {
    %c0_i32 = arith.constant 0 : i32
    %c0_i32_0 = arith.constant 0 : i32
    %c0_i32_1 = arith.constant 0 : i32
    %c0_i32_2 = arith.constant 0 : i32
    return %c0_i32, %c0_i32_0, %c0_i32_1 : i32, i32, i32
  }
}

</mosaic_0001>

<llo_original>
// kernel: tpu_custom_call.1
$region0: #{tpu_custom_call.1}
  #allocation0 [shape = 'u32[]', space=smem, size = 0x4, offset = 0x4, fixed_abs, tag = 'smem constant byte address 0x4 - core index']
  #allocation1 [shape = 'u32[144,128]{1,0:T(1,128)}', space=vmem, size = 0x12000, scoped, tag = 'internal scratch']
  %s0 = inlined_call_operand.vmem [shape: f32[2,8,32], index: 0, kind: input, shape index: {}]
  %s1 = inlined_call_operand.vmem [shape: f32[2,1,32], index: 1, kind: input, shape index: {}]
  %s2 = inlined_call_operand.vmem [shape: f32[2,1,32], index: 2, kind: input, shape index: {}]
  %s3 = inlined_call_operand.vmem [shape: bf16[2,32,96], index: 3, kind: input, shape index: {}]
  %s4 = inlined_call_operand.vmem [shape: f32[2,1,96], index: 4, kind: input, shape index: {}]
  %s5 = inlined_call_operand.vmem [shape: bf16[2,32,32], index: 5, kind: input, shape index: {}]
  %s6 = inlined_call_operand.vmem [shape: f32[2,1,32], index: 6, kind: input, shape index: {}]
  %s7 = inlined_call_operand.vmem [shape: f32[2,1,32], index: 7, kind: input, shape index: {}]
  %s8 = inlined_call_operand.vmem [shape: f32[2,1,32], index: 8, kind: input, shape index: {}]
  %s9 = inlined_call_operand.vmem [shape: bf16[2,32,128], index: 9, kind: input, shape index: {}]
  %s10 = inlined_call_operand.vmem [shape: f32[2,1,128], index: 10, kind: input, shape index: {}]
  %s11 = inlined_call_operand.vmem [shape: bf16[2,128,32], index: 11, kind: input, shape index: {}]
  %s12 = inlined_call_operand.vmem [shape: f32[2,1,32], index: 12, kind: input, shape index: {}]
  %s13 = inlined_call_operand.hbm [shape: f32[2,8,32], index: 13, kind: output, shape index: {}]
  %s14 = sld [smem:[#allocation0]]
  $region89: #{tpu_custom_call.1} parent=0
    _
  %s16 = ssub.s32 1, %s14
  %s17 = scalar_select 0, %s16, %s14
  $region1: #{tpu_custom_call.1} parent=0
    #allocation2 [shape = 'u8[8192]{0}', space=vmem, size = 0x2000, scoped, tag = 'output window, operand 0, single buffered']
    #allocation3 [shape = 's32[2]{0}', space=sflag, size = 0x8, scoped, tag = 'scoped memory for tpu_custom_call.1']
    %18 = vsyncpa [#allocation3], 0
    loop: start=0, step=1, limit=4
    $region2: #{tpu_custom_call.1} parent=1 // loop_pre_header
      _
    $region3: #{tpu_custom_call.1} parent=1 // loop_header
      %s20 = sphi 0, %s24
      %p21 = scmp.ge.s32.totalorder %s20, 4
      %s28 = sphi 0, %s28
      %s30 = sphi 0, %s28
      %s31 = sphi 0, %s30
      %s45 = sphi 0, %s31
      %s51 = sphi 0, %s53
      %s54 = sphi 0, %s51
      %s55 = sphi 0, %s54
      %s71 = sphi 0, %s55
      %s77 = sphi 0, %s79
      %s80 = sphi 0, %s77
      %s81 = sphi 0, %s80
      %s97 = sphi 0, %s81
      %s103 = sphi 0, %s105
      %s106 = sphi 0, %s103
      %s107 = sphi 0, %s106
      %s123 = sphi 0, %s107
      %s129 = sphi 0, %s131
      %s132 = sphi 0, %s129
      %s133 = sphi 0, %s132
      %s149 = sphi 0, %s133
      %s155 = sphi 0, %s157
      %s158 = sphi 0, %s155
      %s159 = sphi 0, %s158
      %s175 = sphi 0, %s159
      %s181 = sphi 0, %s183
      %s184 = sphi 0, %s181
      %s185 = sphi 0, %s184
      %s201 = sphi 0, %s185
      %s207 = sphi 0, %s209
      %s210 = sphi 0, %s207
      %s211 = sphi 0, %s210
      %s227 = sphi 0, %s211
      %s233 = sphi 0, %s235
      %s236 = sphi 0, %s233
      %s237 = sphi 0, %s236
      %s253 = sphi 0, %s237
      %s259 = sphi 0, %s261
      %s262 = sphi 0, %s259
      %s263 = sphi 0, %s262
      %s279 = sphi 0, %s263
      %s285 = sphi 0, %s287
      %s288 = sphi 0, %s285
      %s289 = sphi 0, %s288
      %s305 = sphi 0, %s289
      %s311 = sphi 0, %s313
      %s314 = sphi 0, %s311
      %s315 = sphi 0, %s314
      %s331 = sphi 0, %s315
      %s337 = sphi 0, %s339
      %s340 = sphi 0, %s337
      %s341 = sphi 0, %s340
      %s357 = sphi 0, %s341
      %s361 = sphi 0, %s361
      %s363 = sphi 0, %s361
      %s364 = sphi 0, %s363
      %s378 = sphi 0, %s364
    $region4: #{tpu_custom_call.1} parent=1 // loop_header_branch
      %23 = sbr.rel (%p21) target = $region8
    $region5: #{tpu_custom_call.1} parent=1 // loop_body
      %s25 = ssub.s32 %s20, 1
      %s26 = ssub.s32 %s20, 2
      %s27 = sadd.s32 %s20, 1
      %s29 = sadd.s32 %s28, 1
      %p32 = scmp.eq.s32.totalorder %s20, 1
      %p33 = scmp.ne.s32.totalorder %s28, %s30
      %p34 = scmp.eq.s32.totalorder %s20, 0
      %p35 = por %p33, %p34
      %p36 = scmp.ne.s32.totalorder %s28, %s30
      %p37 = scmp.eq.s32.totalorder %s25, 1
      %p38 = por %p36, %p37
      %p39 = scmp.ne.s32.totalorder %s30, %s31
      %p40 = scmp.eq.s32.totalorder %s25, 0
      %p41 = por %p39, %p40
      %p42 = scmp.ne.s32.totalorder %s30, %s31
      %p43 = scmp.eq.s32.totalorder %s26, 1
      %p44 = por %p42, %p43
      %p46 = scmp.ne.s32.totalorder %s31, %s45
      %p47 = scmp.eq.s32.totalorder %s26, 0
      %p48 = por %p46, %p47
      %s49 = ssub.s32 %s20, %s27
      %p50 = scmp.eq.s32.totalorder %s49, 0
      %s52 = sadd.s32 %s51, 1
      %s53 = scalar_select %p50, %s51, %s52
      %p56 = pneg %p50
      %p57 = scmp.eq.s32.totalorder %s20, 1
      %p58 = por %p56, %p57
      %p59 = scmp.ne.s32.totalorder %s51, %s54
      %p60 = scmp.eq.s32.totalorder %s20, 0
      %p61 = por %p59, %p60
      %p62 = scmp.ne.s32.totalorder %s51, %s54
      %p63 = scmp.eq.s32.totalorder %s25, 1
      %p64 = por %p62, %p63
      %p65 = scmp.ne.s32.totalorder %s54, %s55
      %p66 = scmp.eq.s32.totalorder %s25, 0
      %p67 = por %p65, %p66
      %p68 = scmp.ne.s32.totalorder %s54, %s55
      %p69 = scmp.eq.s32.totalorder %s26, 1
      %p70 = por %p68, %p69
      %p72 = scmp.ne.s32.totalorder %s55, %s71
      %p73 = scmp.eq.s32.totalorder %s26, 0
      %p74 = por %p72, %p73
      %s75 = ssub.s32 %s20, %s27
      %p76 = scmp.eq.s32.totalorder %s75, 0
      %s78 = sadd.s32 %s77, 1
      %s79 = scalar_select %p76, %s77, %s78
      %p82 = pneg %p76
      %p83 = scmp.eq.s32.totalorder %s20, 1
      %p84 = por %p82, %p83
      %p85 = scmp.ne.s32.totalorder %s77, %s80
      %p86 = scmp.eq.s32.totalorder %s20, 0
      %p87 = por %p85, %p86
      %p88 = scmp.ne.s32.totalorder %s77, %s80
      %p89 = scmp.eq.s32.totalorder %s25, 1
      %p90 = por %p88, %p89
      %p91 = scmp.ne.s32.totalorder %s80, %s81
      %p92 = scmp.eq.s32.totalorder %s25, 0
      %p93 = por %p91, %p92
      %p94 = scmp.ne.s32.totalorder %s80, %s81
      %p95 = scmp.eq.s32.totalorder %s26, 1
      %p96 = por %p94, %p95
      %p98 = scmp.ne.s32.totalorder %s81, %s97
      %p99 = scmp.eq.s32.totalorder %s26, 0
      %p100 = por %p98, %p99
      %s101 = ssub.s32 %s20, %s27
      %p102 = scmp.eq.s32.totalorder %s101, 0
      %s104 = sadd.s32 %s103, 1
      %s105 = scalar_select %p102, %s103, %s104
      %p108 = pneg %p102
      %p109 = scmp.eq.s32.totalorder %s20, 1
      %p110 = por %p108, %p109
      %p111 = scmp.ne.s32.totalorder %s103, %s106
      %p112 = scmp.eq.s32.totalorder %s20, 0
      %p113 = por %p111, %p112
      %p114 = scmp.ne.s32.totalorder %s103, %s106
      %p115 = scmp.eq.s32.totalorder %s25, 1
      %p116 = por %p114, %p115
      %p117 = scmp.ne.s32.totalorder %s106, %s107
      %p118 = scmp.eq.s32.totalorder %s25, 0
      %p119 = por %p117, %p118
      %p120 = scmp.ne.s32.totalorder %s106, %s107
      %p121 = scmp.eq.s32.totalorder %s26, 1
      %p122 = por %p120, %p121
      %p124 = scmp.ne.s32.totalorder %s107, %s123
      %p125 = scmp.eq.s32.totalorder %s26, 0
      %p126 = por %p124, %p125
      %s127 = ssub.s32 %s20, %s27
      %p128 = scmp.eq.s32.totalorder %s127, 0
      %s130 = sadd.s32 %s129, 1
      %s131 = scalar_select %p128, %s129, %s130
      %p134 = pneg %p128
      %p135 = scmp.eq.s32.totalorder %s20, 1
      %p136 = por %p134, %p135
      %p137 = scmp.ne.s32.totalorder %s129, %s132
      %p138 = scmp.eq.s32.totalorder %s20, 0
      %p139 = por %p137, %p138
      %p140 = scmp.ne.s32.totalorder %s129, %s132
      %p141 = scmp.eq.s32.totalorder %s25, 1
      %p142 = por %p140, %p141
      %p143 = scmp.ne.s32.totalorder %s132, %s133
      %p144 = scmp.eq.s32.totalorder %s25, 0
      %p145 = por %p143, %p144
      %p146 = scmp.ne.s32.totalorder %s132, %s133
      %p147 = scmp.eq.s32.totalorder %s26, 1
      %p148 = por %p146, %p147
      %p150 = scmp.ne.s32.totalorder %s133, %s149
      %p151 = scmp.eq.s32.totalorder %s26, 0
      %p152 = por %p150, %p151
      %s153 = ssub.s32 %s20, %s27
      %p154 = scmp.eq.s32.totalorder %s153, 0
      %s156 = sadd.s32 %s155, 1
      %s157 = scalar_select %p154, %s155, %s156
      %p160 = pneg %p154
      %p161 = scmp.eq.s32.totalorder %s20, 1
      %p162 = por %p160, %p161
      %p163 = scmp.ne.s32.totalorder %s155, %s158
      %p164 = scmp.eq.s32.totalorder %s20, 0
      %p165 = por %p163, %p164
      %p166 = scmp.ne.s32.totalorder %s155, %s158
      %p167 = scmp.eq.s32.totalorder %s25, 1
      %p168 = por %p166, %p167
      %p169 = scmp.ne.s32.totalorder %s158, %s159
      %p170 = scmp.eq.s32.totalorder %s25, 0
      %p171 = por %p169, %p170
      %p172 = scmp.ne.s32.totalorder %s158, %s159
      %p173 = scmp.eq.s32.totalorder %s26, 1
      %p174 = por %p172, %p173
      %p176 = scmp.ne.s32.totalorder %s159, %s175
      %p177 = scmp.eq.s32.totalorder %s26, 0
      %p178 = por %p176, %p177
      %s179 = ssub.s32 %s20, %s27
      %p180 = scmp.eq.s32.totalorder %s179, 0
      %s182 = sadd.s32 %s181, 1
      %s183 = scalar_select %p180, %s181, %s182
      %p186 = pneg %p180
      %p187 = scmp.eq.s32.totalorder %s20, 1
      %p188 = por %p186, %p187
      %p189 = scmp.ne.s32.totalorder %s181, %s184
      %p190 = scmp.eq.s32.totalorder %s20, 0
      %p191 = por %p189, %p190
      %p192 = scmp.ne.s32.totalorder %s181, %s184
      %p193 = scmp.eq.s32.totalorder %s25, 1
      %p194 = por %p192, %p193
      %p195 = scmp.ne.s32.totalorder %s184, %s185
      %p196 = scmp.eq.s32.totalorder %s25, 0
      %p197 = por %p195, %p196
      %p198 = scmp.ne.s32.totalorder %s184, %s185
      %p199 = scmp.eq.s32.totalorder %s26, 1
      %p200 = por %p198, %p199
      %p202 = scmp.ne.s32.totalorder %s185, %s201
      %p203 = scmp.eq.s32.totalorder %s26, 0
      %p204 = por %p202, %p203
      %s205 = ssub.s32 %s20, %s27
      %p206 = scmp.eq.s32.totalorder %s205, 0
      %s208 = sadd.s32 %s207, 1
      %s209 = scalar_select %p206, %s207, %s208
      %p212 = pneg %p206
      %p213 = scmp.eq.s32.totalorder %s20, 1
      %p214 = por %p212, %p213
      %p215 = scmp.ne.s32.totalorder %s207, %s210
      %p216 = scmp.eq.s32.totalorder %s20, 0
      %p217 = por %p215, %p216
      %p218 = scmp.ne.s32.totalorder %s207, %s210
      %p219 = scmp.eq.s32.totalorder %s25, 1
      %p220 = por %p218, %p219
      %p221 = scmp.ne.s32.totalorder %s210, %s211
      %p222 = scmp.eq.s32.totalorder %s25, 0
      %p223 = por %p221, %p222
      %p224 = scmp.ne.s32.totalorder %s210, %s211
      %p225 = scmp.eq.s32.totalorder %s26, 1
      %p226 = por %p224, %p225
      %p228 = scmp.ne.s32.totalorder %s211, %s227
      %p229 = scmp.eq.s32.totalorder %s26, 0
      %p230 = por %p228, %p229
      %s231 = ssub.s32 %s20, %s27
      %p232 = scmp.eq.s32.totalorder %s231, 0
      %s234 = sadd.s32 %s233, 1
      %s235 = scalar_select %p232, %s233, %s234
      %p238 = pneg %p232
      %p239 = scmp.eq.s32.totalorder %s20, 1
      %p240 = por %p238, %p239
      %p241 = scmp.ne.s32.totalorder %s233, %s236
      %p242 = scmp.eq.s32.totalorder %s20, 0
      %p243 = por %p241, %p242
      %p244 = scmp.ne.s32.totalorder %s233, %s236
      %p245 = scmp.eq.s32.totalorder %s25, 1
      %p246 = por %p244, %p245
      %p247 = scmp.ne.s32.totalorder %s236, %s237
      %p248 = scmp.eq.s32.totalorder %s25, 0
      %p249 = por %p247, %p248
      %p250 = scmp.ne.s32.totalorder %s236, %s237
      %p251 = scmp.eq.s32.totalorder %s26, 1
      %p252 = por %p250, %p251
      %p254 = scmp.ne.s32.totalorder %s237, %s253
      %p255 = scmp.eq.s32.totalorder %s26, 0
      %p256 = por %p254, %p255
      %s257 = ssub.s32 %s20, %s27
      %p258 = scmp.eq.s32.totalorder %s257, 0
      %s260 = sadd.s32 %s259, 1
      %s261 = scalar_select %p258, %s259, %s260
      %p264 = pneg %p258
      %p265 = scmp.eq.s32.totalorder %s20, 1
      %p266 = por %p264, %p265
      %p267 = scmp.ne.s32.totalorder %s259, %s262
      %p268 = scmp.eq.s32.totalorder %s20, 0
      %p269 = por %p267, %p268
      %p270 = scmp.ne.s32.totalorder %s259, %s262
      %p271 = scmp.eq.s32.totalorder %s25, 1
      %p272 = por %p270, %p271
      %p273 = scmp.ne.s32.totalorder %s262, %s263
      %p274 = scmp.eq.s32.totalorder %s25, 0
      %p275 = por %p273, %p274
      %p276 = scmp.ne.s32.totalorder %s262, %s263
      %p277 = scmp.eq.s32.totalorder %s26, 1
      %p278 = por %p276, %p277
      %p280 = scmp.ne.s32.totalorder %s263, %s279
      %p281 = scmp.eq.s32.totalorder %s26, 0
      %p282 = por %p280, %p281
      %s283 = ssub.s32 %s20, %s27
      %p284 = scmp.eq.s32.totalorder %s283, 0
      %s286 = sadd.s32 %s285, 1
      %s287 = scalar_select %p284, %s285, %s286
      %p290 = pneg %p284
      %p291 = scmp.eq.s32.totalorder %s20, 1
      %p292 = por %p290, %p291
      %p293 = scmp.ne.s32.totalorder %s285, %s288
      %p294 = scmp.eq.s32.totalorder %s20, 0
      %p295 = por %p293, %p294
      %p296 = scmp.ne.s32.totalorder %s285, %s288
      %p297 = scmp.eq.s32.totalorder %s25, 1
      %p298 = por %p296, %p297
      %p299 = scmp.ne.s32.totalorder %s288, %s289
      %p300 = scmp.eq.s32.totalorder %s25, 0
      %p301 = por %p299, %p300
      %p302 = scmp.ne.s32.totalorder %s288, %s289
      %p303 = scmp.eq.s32.totalorder %s26, 1
      %p304 = por %p302, %p303
      %p306 = scmp.ne.s32.totalorder %s289, %s305
      %p307 = scmp.eq.s32.totalorder %s26, 0
      %p308 = por %p306, %p307
      %s309 = ssub.s32 %s20, %s27
      %p310 = scmp.eq.s32.totalorder %s309, 0
      %s312 = sadd.s32 %s311, 1
      %s313 = scalar_select %p310, %s311, %s312
      %p316 = pneg %p310
      %p317 = scmp.eq.s32.totalorder %s20, 1
      %p318 = por %p316, %p317
      %p319 = scmp.ne.s32.totalorder %s311, %s314
      %p320 = scmp.eq.s32.totalorder %s20, 0
      %p321 = por %p319, %p320
      %p322 = scmp.ne.s32.totalorder %s311, %s314
      %p323 = scmp.eq.s32.totalorder %s25, 1
      %p324 = por %p322, %p323
      %p325 = scmp.ne.s32.totalorder %s314, %s315
      %p326 = scmp.eq.s32.totalorder %s25, 0
      %p327 = por %p325, %p326
      %p328 = scmp.ne.s32.totalorder %s314, %s315
      %p329 = scmp.eq.s32.totalorder %s26, 1
      %p330 = por %p328, %p329
      %p332 = scmp.ne.s32.totalorder %s315, %s331
      %p333 = scmp.eq.s32.totalorder %s26, 0
      %p334 = por %p332, %p333
      %s335 = ssub.s32 %s20, %s27
      %p336 = scmp.eq.s32.totalorder %s335, 0
      %s338 = sadd.s32 %s337, 1
      %s339 = scalar_select %p336, %s337, %s338
      %p342 = pneg %p336
      %p343 = scmp.eq.s32.totalorder %s20, 1
      %p344 = por %p342, %p343
      %p345 = scmp.ne.s32.totalorder %s337, %s340
      %p346 = scmp.eq.s32.totalorder %s20, 0
      %p347 = por %p345, %p346
      %p348 = scmp.ne.s32.totalorder %s337, %s340
      %p349 = scmp.eq.s32.totalorder %s25, 1
      %p350 = por %p348, %p349
      %p351 = scmp.ne.s32.totalorder %s340, %s341
      %p352 = scmp.eq.s32.totalorder %s25, 0
      %p353 = por %p351, %p352
      %p354 = scmp.ne.s32.totalorder %s340, %s341
      %p355 = scmp.eq.s32.totalorder %s26, 1
      %p356 = por %p354, %p355
      %p358 = scmp.ne.s32.totalorder %s341, %s357
      %p359 = scmp.eq.s32.totalorder %s26, 0
      %p360 = por %p358, %p359
      %s362 = sadd.s32 %s361, 1
      %p365 = scmp.eq.s32.totalorder %s20, 1
      %p366 = scmp.ne.s32.totalorder %s361, %s363
      %p367 = scmp.eq.s32.totalorder %s20, 0
      %p368 = por %p366, %p367
      %p369 = scmp.ne.s32.totalorder %s361, %s363
      %p370 = scmp.eq.s32.totalorder %s25, 1
      %p371 = por %p369, %p370
      %p372 = scmp.ne.s32.totalorder %s363, %s364
      %p373 = scmp.eq.s32.totalorder %s25, 0
      %p374 = por %p372, %p373
      %p375 = scmp.ne.s32.totalorder %s363, %s364
      %p376 = scmp.eq.s32.totalorder %s26, 1
      %p377 = por %p375, %p376
      %p379 = scmp.ne.s32.totalorder %s364, %s378
      %p380 = scmp.eq.s32.totalorder %s26, 0
      %p381 = por %p379, %p380
      %p382 = scmp.le.s32.totalorder 1, %s20
      %p383 = scmp.lt.s32.totalorder %s20, 3
      %p384 = pnand %p382, %p383
      %p385 = pneg %p384
      // Predicated region
      $region9: #{tpu_custom_call.1} parent=5 // pred_check
        _
      $region10: #{tpu_custom_call.1} parent=5 // pred_check_branch
        %387 = sbr.rel (%p384) target = $region12
      $region11: #{tpu_custom_call.1} parent=5 // pred_region
        %s388 = ssub.s32 %s20, 1
        // Predicated region
        $region13: #{tpu_custom_call.1} parent=11 // pred_check
          %p389 = pneg %p41
        $region14: #{tpu_custom_call.1} parent=11 // pred_check_branch
          %391 = sbr.rel (%p389) target = $region16
        $region15: #{tpu_custom_call.1} parent=11 // pred_region
          _
        $region16: #{tpu_custom_call.1} parent=11 // pred_fallthru
          _
      $region12: #{tpu_custom_call.1} parent=5 // pred_fallthru
        _
      %p392 = scmp.lt.s32.totalorder %s20, 2
      // Predicated region
      $region17: #{tpu_custom_call.1} parent=5 // pred_check
        %p393 = pneg %p392
      $region18: #{tpu_custom_call.1} parent=5 // pred_check_branch
        %395 = sbr.rel (%p393) target = $region20
      $region19: #{tpu_custom_call.1} parent=5 // pred_region
        // Predicated region
        $region21: #{tpu_custom_call.1} parent=19 // pred_check
          %p396 = pneg %p61
        $region22: #{tpu_custom_call.1} parent=19 // pred_check_branch
          %398 = sbr.rel (%p396) target = $region24
        $region23: #{tpu_custom_call.1} parent=19 // pred_region
          %p399 = scmp.lt.s32.totalorder %s20, 1
          %s400 = scalar_select %p399, %s20, 1
          %s401 = scalar_lea.vmem %s1, %s400
        $region24: #{tpu_custom_call.1} parent=19 // pred_fallthru
          _
        // Predicated region
        $region25: #{tpu_custom_call.1} parent=19 // pred_check
          %p402 = pneg %p87
        $region26: #{tpu_custom_call.1} parent=19 // pred_check_branch
          %404 = sbr.rel (%p402) target = $region28
        $region27: #{tpu_custom_call.1} parent=19 // pred_region
          %p405 = scmp.lt.s32.totalorder %s20, 1
          %s406 = scalar_select %p405, %s20, 1
          %s407 = scalar_lea.vmem %s2, %s406
        $region28: #{tpu_custom_call.1} parent=19 // pred_fallthru
          _
        // Predicated region
        $region29: #{tpu_custom_call.1} parent=19 // pred_check
          %p408 = pneg %p113
        $region30: #{tpu_custom_call.1} parent=19 // pred_check_branch
          %410 = sbr.rel (%p408) target = $region32
        $region31: #{tpu_custom_call.1} parent=19 // pred_region
          %p411 = scmp.lt.s32.totalorder %s20, 1
          %s412 = scalar_select %p411, %s20, 1
          %s413 = smul.addr %s412, 4
          %s414 = smul.addr %s413, 4
          %s415 = scalar_lea.vmem %s3, %s414
        $region32: #{tpu_custom_call.1} parent=19 // pred_fallthru
          _
        // Predicated region
        $region33: #{tpu_custom_call.1} parent=19 // pred_check
          %p416 = pneg %p139
        $region34: #{tpu_custom_call.1} parent=19 // pred_check_branch
          %418 = sbr.rel (%p416) target = $region36
        $region35: #{tpu_custom_call.1} parent=19 // pred_region
          %p419 = scmp.lt.s32.totalorder %s20, 1
          %s420 = scalar_select %p419, %s20, 1
          %s421 = scalar_lea.vmem %s4, %s420
        $region36: #{tpu_custom_call.1} parent=19 // pred_fallthru
          _
        // Predicated region
        $region37: #{tpu_custom_call.1} parent=19 // pred_check
          %p422 = pneg %p165
        $region38: #{tpu_custom_call.1} parent=19 // pred_check_branch
          %424 = sbr.rel (%p422) target = $region40
        $region39: #{tpu_custom_call.1} parent=19 // pred_region
          %p425 = scmp.lt.s32.totalorder %s20, 1
          %s426 = scalar_select %p425, %s20, 1
          %s427 = smul.addr %s426, 4
          %s428 = smul.addr %s427, 4
          %s429 = scalar_lea.vmem %s5, %s428
        $region40: #{tpu_custom_call.1} parent=19 // pred_fallthru
          _
        // Predicated region
        $region41: #{tpu_custom_call.1} parent=19 // pred_check
          %p430 = pneg %p191
        $region42: #{tpu_custom_call.1} parent=19 // pred_check_branch
          %432 = sbr.rel (%p430) target = $region44
        $region43: #{tpu_custom_call.1} parent=19 // pred_region
          %p433 = scmp.lt.s32.totalorder %s20, 1
          %s434 = scalar_select %p433, %s20, 1
          %s435 = scalar_lea.vmem %s6, %s434
        $region44: #{tpu_custom_call.1} parent=19 // pred_fallthru
          _
        // Predicated region
        $region45: #{tpu_custom_call.1} parent=19 // pred_check
          %p436 = pneg %p217
        $region46: #{tpu_custom_call.1} parent=19 // pred_check_branch
          %438 = sbr.rel (%p436) target = $region48
        $region47: #{tpu_custom_call.1} parent=19 // pred_region
          %p439 = scmp.lt.s32.totalorder %s20, 1
          %s440 = scalar_select %p439, %s20, 1
          %s441 = scalar_lea.vmem %s7, %s440
        $region48: #{tpu_custom_call.1} parent=19 // pred_fallthru
          _
        // Predicated region
        $region49: #{tpu_custom_call.1} parent=19 // pred_check
          %p442 = pneg %p243
        $region50: #{tpu_custom_call.1} parent=19 // pred_check_branch
          %444 = sbr.rel (%p442) target = $region52
        $region51: #{tpu_custom_call.1} parent=19 // pred_region
          %p445 = scmp.lt.s32.totalorder %s20, 1
          %s446 = scalar_select %p445, %s20, 1
          %s447 = scalar_lea.vmem %s8, %s446
        $region52: #{tpu_custom_call.1} parent=19 // pred_fallthru
          _
        // Predicated region
        $region53: #{tpu_custom_call.1} parent=19 // pred_check
          %p448 = pneg %p269
        $region54: #{tpu_custom_call.1} parent=19 // pred_check_branch
          %450 = sbr.rel (%p448) target = $region56
        $region55: #{tpu_custom_call.1} parent=19 // pred_region
          %p451 = scmp.lt.s32.totalorder %s20, 1
          %s452 = scalar_select %p451, %s20, 1
          %s453 = smul.addr %s452, 4
          %s454 = smul.addr %s453, 4
          %s455 = scalar_lea.vmem %s9, %s454
        $region56: #{tpu_custom_call.1} parent=19 // pred_fallthru
          _
        // Predicated region
        $region57: #{tpu_custom_call.1} parent=19 // pred_check
          %p456 = pneg %p295
        $region58: #{tpu_custom_call.1} parent=19 // pred_check_branch
          %458 = sbr.rel (%p456) target = $region60
        $region59: #{tpu_custom_call.1} parent=19 // pred_region
          %p459 = scmp.lt.s32.totalorder %s20, 1
          %s460 = scalar_select %p459, %s20, 1
          %s461 = scalar_lea.vmem %s10, %s460
        $region60: #{tpu_custom_call.1} parent=19 // pred_fallthru
          _
        // Predicated region
        $region61: #{tpu_custom_call.1} parent=19 // pred_check
          %p462 = pneg %p321
        $region62: #{tpu_custom_call.1} parent=19 // pred_check_branch
          %464 = sbr.rel (%p462) target = $region64
        $region63: #{tpu_custom_call.1} parent=19 // pred_region
          %p465 = scmp.lt.s32.totalorder %s20, 1
          %s466 = scalar_select %p465, %s20, 1
          %s467 = smul.addr %s466, 16
          %s468 = smul.addr %s467, 4
          %s469 = scalar_lea.vmem %s11, %s468
        $region64: #{tpu_custom_call.1} parent=19 // pred_fallthru
          _
        // Predicated region
        $region65: #{tpu_custom_call.1} parent=19 // pred_check
          %p470 = pneg %p347
        $region66: #{tpu_custom_call.1} parent=19 // pred_check_branch
          %472 = sbr.rel (%p470) target = $region68
        $region67: #{tpu_custom_call.1} parent=19 // pred_region
          %p473 = scmp.lt.s32.totalorder %s20, 1
          %s474 = scalar_select %p473, %s20, 1
          %s475 = scalar_lea.vmem %s12, %s474
        $region68: #{tpu_custom_call.1} parent=19 // pred_fallthru
          _
      $region20: #{tpu_custom_call.1} parent=5 // pred_fallthru
        _
      %p476 = scmp.le.s32.totalorder 1, %s20
      %p477 = scmp.lt.s32.totalorder %s20, 3
      %p478 = pnand %p476, %p477
      %p479 = pneg %p478
      // Predicated region
      $region69: #{tpu_custom_call.1} parent=5 // pred_check
        _
      $region70: #{tpu_custom_call.1} parent=5 // pred_check_branch
        %481 = sbr.rel (%p478) target = $region72
      $region71: #{tpu_custom_call.1} parent=5 // pred_region
        %s482 = ssub.s32 %s20, 1
        %p483 = pneg %p41
        %p484 = pneg %p38
        %p485 = scmp.lt.s32.totalorder %s25, 1
        %s486 = scalar_select %p485, %s25, 1
        %s487 = scalar_lea.vmem %s1, %s486
        %p488 = pneg %p67
        %p489 = pneg %p64
        %p490 = scmp.lt.s32.totalorder %s25, 1
        %s491 = scalar_select %p490, %s25, 1
        %s492 = scalar_lea.vmem %s2, %s491
        %p493 = pneg %p93
        %p494 = pneg %p90
        %p495 = scmp.lt.s32.totalorder %s25, 1
        %s496 = scalar_select %p495, %s25, 1
        %s497 = smul.addr %s496, 4
        %s498 = smul.addr %s497, 4
        %s499 = scalar_lea.vmem %s3, %s498
        %p500 = pneg %p119
        %p501 = pneg %p116
        %p502 = scmp.lt.s32.totalorder %s25, 1
        %s503 = scalar_select %p502, %s25, 1
        %s504 = scalar_lea.vmem %s4, %s503
        %p505 = pneg %p145
        %p506 = pneg %p142
        %p507 = scmp.lt.s32.totalorder %s25, 1
        %s508 = scalar_select %p507, %s25, 1
        %s509 = smul.addr %s508, 4
        %s510 = smul.addr %s509, 4
        %s511 = scalar_lea.vmem %s5, %s510
        %p512 = pneg %p171
        %p513 = pneg %p168
        %p514 = scmp.lt.s32.totalorder %s25, 1
        %s515 = scalar_select %p514, %s25, 1
        %s516 = scalar_lea.vmem %s6, %s515
        %p517 = pneg %p197
        %p518 = pneg %p194
        %p519 = scmp.lt.s32.totalorder %s25, 1
        %s520 = scalar_select %p519, %s25, 1
        %s521 = scalar_lea.vmem %s7, %s520
        %p522 = pneg %p223
        %p523 = pneg %p220
        %p524 = scmp.lt.s32.totalorder %s25, 1
        %s525 = scalar_select %p524, %s25, 1
        %s526 = scalar_lea.vmem %s8, %s525
        %p527 = pneg %p249
        %p528 = pneg %p246
        %p529 = scmp.lt.s32.totalorder %s25, 1
        %s530 = scalar_select %p529, %s25, 1
        %s531 = smul.addr %s530, 4
        %s532 = smul.addr %s531, 4
        %s533 = scalar_lea.vmem %s9, %s532
        %p534 = pneg %p275
        %p535 = pneg %p272
        %p536 = scmp.lt.s32.totalorder %s25, 1
        %s537 = scalar_select %p536, %s25, 1
        %s538 = scalar_lea.vmem %s10, %s537
        %p539 = pneg %p301
        %p540 = pneg %p298
        %p541 = scmp.lt.s32.totalorder %s25, 1
        %s542 = scalar_select %p541, %s25, 1
        %s543 = smul.addr %s542, 16
        %s544 = smul.addr %s543, 4
        %s545 = scalar_lea.vmem %s11, %s544
        %p546 = pneg %p327
        %p547 = pneg %p324
        %p548 = scmp.lt.s32.totalorder %s25, 1
        %s549 = scalar_select %p548, %s25, 1
        %s550 = scalar_lea.vmem %s12, %s549
        %p551 = pneg %p353
        %p552 = pneg %p350
        %p553 = pneg %p374
        %p554 = pneg %p371
        %p555 = scmp.lt.s32.totalorder %s25, 1
        %s556 = scalar_select %p555, %s25, 1
        %s557 = scalar_lea.vmem %s1, %s556
        %p558 = scmp.lt.s32.totalorder %s25, 1
        %s559 = scalar_select %p558, %s25, 1
        %s560 = scalar_lea.vmem %s2, %s559
        %p561 = scmp.lt.s32.totalorder %s25, 1
        %s562 = scalar_select %p561, %s25, 1
        %s563 = smul.addr %s562, 4
        %s564 = smul.addr %s563, 4
        %s565 = scalar_lea.vmem %s3, %s564
        %p566 = scmp.lt.s32.totalorder %s25, 1
        %s567 = scalar_select %p566, %s25, 1
        %s568 = scalar_lea.vmem %s4, %s567
        %p569 = scmp.lt.s32.totalorder %s25, 1
        %s570 = scalar_select %p569, %s25, 1
        %s571 = smul.addr %s570, 4
        %s572 = smul.addr %s571, 4
        %s573 = scalar_lea.vmem %s5, %s572
        %p574 = scmp.lt.s32.totalorder %s25, 1
        %s575 = scalar_select %p574, %s25, 1
        %s576 = scalar_lea.vmem %s6, %s575
        %p577 = scmp.lt.s32.totalorder %s25, 1
        %s578 = scalar_select %p577, %s25, 1
        %s579 = scalar_lea.vmem %s7, %s578
        %p580 = scmp.lt.s32.totalorder %s25, 1
        %s581 = scalar_select %p580, %s25, 1
        %s582 = scalar_lea.vmem %s8, %s581
        %p583 = scmp.lt.s32.totalorder %s25, 1
        %s584 = scalar_select %p583, %s25, 1
        %s585 = smul.addr %s584, 4
        %s586 = smul.addr %s585, 4
        %s587 = scalar_lea.vmem %s9, %s586
        %p588 = scmp.lt.s32.totalorder %s25, 1
        %s589 = scalar_select %p588, %s25, 1
        %s590 = scalar_lea.vmem %s10, %s589
        %p591 = scmp.lt.s32.totalorder %s25, 1
        %s592 = scalar_select %p591, %s25, 1
        %s593 = smul.addr %s592, 16
        %s594 = smul.addr %s593, 4
        %s595 = scalar_lea.vmem %s11, %s594
        %p596 = scmp.lt.s32.totalorder %s25, 1
        %s597 = scalar_select %p596, %s25, 1
        %s598 = scalar_lea.vmem %s12, %s597
        %p600 = scmp.eq.s32.totalorder %s25, 0
        // Predicated region
        $region73: #{tpu_custom_call.1} parent=71 // pred_check
          %p601 = pneg %p600
        $region74: #{tpu_custom_call.1} parent=71 // pred_check_branch
          %603 = sbr.rel (%p601) target = $region76
        $region75: #{tpu_custom_call.1} parent=71 // pred_region
          %v604 = vld [vmem:[%s0] sm:$0xff]
          %v605 = vld [vmem:[%s0 + $0x8] sm:$0xff]
          %vm606 = vcmask 261120
          %607 = vst.msk [vmem:[#allocation2] sm:$0xff] %vm606, %v604
          %608 = vst.msk [vmem:[#allocation2 + $0x8] sm:$0xff] %vm606, %v605
        $region76: #{tpu_custom_call.1} parent=71 // pred_fallthru
          _
        %v609 = vld [vmem:[#allocation2] sm:$0xff]
        %v610 = vld [vmem:[#allocation2 + $0x8] sm:$0xff]
        %v611 = vld [vmem:[%s557] sm:$0x1]
        %v612 = vld [vmem:[%s560] sm:$0x1]
        %vm613 = vcmask 261120
        %v614 = vsel %vm613, %v609, 0.0
        %615 = vadd.xlane.f32.xlu0 %v614
        %v616 = vpop.xlane.xlu0 %615
        %v617 = vsel %vm613, %v610, 0.0
        %618 = vadd.xlane.f32.xlu0 %v617
        %v619 = vpop.xlane.xlu0 %618
        %v620 = vrcp.pop 32.0
        %v621 = vmul.f32 %v616, %v620
        %v622 = vmul.f32 %v619, %v620
        %v623 = vsub.f32 %v609, %v621
        %v624 = vsub.f32 %v610, %v622
        %v625 = vmul.f32 %v623, %v623
        %v626 = vmul.f32 %v624, %v624
        %v627 = vsel %vm613, %v625, 0.0
        %628 = vadd.xlane.f32.xlu0 %v627
        %v629 = vpop.xlane.xlu0 %628
        %v630 = vsel %vm613, %v626, 0.0
        %631 = vadd.xlane.f32.xlu0 %v630
        %v632 = vpop.xlane.xlu0 %631
        %v633 = vmul.f32 %v629, %v620
        %v634 = vmul.f32 %v632, %v620
        %v635 = vadd.f32 %v633, 1e-05
        %v636 = vadd.f32 %v634, 1e-05
        %v637 = vrsqrt.pop %v635
        %v638 = vrsqrt.pop %v636
        %v639 = vmul.f32 %v623, %v637
        %v640 = vmul.f32 %v624, %v638
        %v642 = vlaneseq
        %v643 = vshrl.u32 %v642, 7
        %v644 = vsub.s32 0, %v643
        %v645 = vrot.slane %v611, %v644
        %v647 = vmul.f32 %v639, %v645
        %v648 = vmul.f32 %v640, %v645
        %v650 = vlaneseq
        %v651 = vshrl.u32 %v650, 7
        %v652 = vsub.s32 0, %v651
        %v653 = vrot.slane %v612, %v652
        %v655 = vadd.f32 %v647, %v653
        %v656 = vadd.f32 %v648, %v653
        %v657 = vpack.c.bf16 %v656, %v655
        %v658 = vld [vmem:[%s565] sm:$0xf]
        %v659 = vld [vmem:[%s565 + $0x4] sm:$0xf]
        %v660 = vld [vmem:[%s565 + $0x8] sm:$0xf]
        %v661 = vld [vmem:[%s565 + $0xc] sm:$0xf]
        %v662 = vld [vmem:[%s568] sm:$0x1]
        %v664 = vlaneseq
        %v665 = vshrl.u32 %v664, 7
        %v666 = vsub.s32 0, %v665
        %v667 = vrot.slane %v662, %v666
        %v673 = vunpack.c.l.b16 %v658
        %v674 = vunpack.c.l.b16 %v659
        %v675 = vunpack.c.l.b16 %v660
        %v676 = vunpack.c.l.b16 %v661
        %v677 = vpack.c.b16 %v674, %v673
        %v678 = vpack.c.b16 %v676, %v675
        %v682 = vsel %vm613, %v657, 0
        %684 = vmatprep.subr.bf16.mxu0 0
        %685 = vmatpush1.bf16.msra.mxu0 %v677
        %686 = vmatprep.subr.bf16.mxu0 0
        %687 = vmatpush1.bf16.msra.mxu0 %v678
        %688 = vmatprep.subr.bf16.mxu0 0
        %689 = vmatpush1.bf16.msra.mxu0 0
        %690 = vmatprep.subr.bf16.mxu0 0
        %691 = vmatpush1.bf16.msra.mxu0 0
        %692 = vmatprep.subr.bf16.mxu0 0
        %693 = vmatpush1.bf16.msra.mxu0 0
        %694 = vmatprep.subr.bf16.mxu0 0
        %695 = vmatpush1.bf16.msra.mxu0 0
        %696 = vmatprep.subr.bf16.mxu0 0
        %697 = vmatpush1.bf16.msra.mxu0 0
        %698 = vmatprep.subr.bf16.mxu0 0
        %699 = vmatpush1.bf16.msra.mxu0 0
        %700 = vmatprep.subr.bf16.mxu0 0
        %701 = vmatpush1.bf16.msra.mxu0 0
        %702 = vmatprep.subr.bf16.mxu0 0
        %703 = vmatpush1.bf16.msra.mxu0 0
        %704 = vmatprep.subr.bf16.mxu0 0
        %705 = vmatpush1.bf16.msra.mxu0 0
        %706 = vmatprep.subr.bf16.mxu0 0
        %707 = vmatpush1.bf16.msra.mxu0 0
        %708 = vmatprep.subr.bf16.mxu0 0
        %709 = vmatpush1.bf16.msra.mxu0 0
        %710 = vmatprep.subr.bf16.mxu0 0
        %711 = vmatpush1.bf16.msra.mxu0 0
        %712 = vmatprep.subr.bf16.mxu0 0
        %713 = vmatpush1.bf16.msra.mxu0 0
        %714 = vmatprep.subr.bf16.mxu0 0
        %715 = vmatpush1.bf16.msra.mxu0 0
        %716 = vmatprep.mubr.bf16.mxu0 0
        %717 = vmatmul.mubr.bf16.gmra.mrb[0].mxu0 %v682
        %v718 = vpop.f32.mrb[0].mxu0
        %v719 = vadd.f32 %v667, %v718
        %v720 = vpop.f32.mrb[0].mxu0
        %v721 = vpop.f32.mrb[0].mxu0
        %v722 = vadd.f32 %v667, %v721
        %v723 = vpop.f32.mrb[0].mxu0
        %724 = vdwg.mxu0
        %v725 = vpack.c.bf16 %v722, %v719
        %v726 = vlaneseq
        %v727 = vshrl.u32 %v726, 7
        %v728 = vlaneseq
        %v729 = vand.u32 %v728, 127
        %vm730 = vcmp.gt.s32.totalorder %v729, %v727
        %v731 = vsel %vm730, -1e+30, 0.0
        %v733 = vunpack.c.l.b16 %v725
        %v734 = vunpack.c.h.b16 %v725
        %v735 = vpack.c.b16 %v733, %v733
        %v736 = vpack.c.b16 %v734, %v734
        %737 = vrot.lane.b32.xlu0 %v735, 96
        %v738 = vpop.permute.xlu0 %737
        %vm739 = vcmask 64512
        %v741 = vsel %vm739, %v735, 0
        %v744 = vsel %vm739, %v738, 0
        %746 = vmatprep.subr.bf16.mxu0 0
        %747 = vmatpush1.bf16.xpose.msra.mxu0 %v744
        %748 = vmatprep.subr.bf16.mxu0 0
        %749 = vmatpush1.bf16.xpose.msra.mxu0 0
        %750 = vmatprep.subr.bf16.mxu0 0
        %751 = vmatpush1.bf16.xpose.msra.mxu0 0
        %752 = vmatprep.subr.bf16.mxu0 0
        %753 = vmatpush1.bf16.xpose.msra.mxu0 0
        %754 = vmatprep.subr.bf16.mxu0 0
        %755 = vmatpush1.bf16.xpose.msra.mxu0 0
        %756 = vmatprep.subr.bf16.mxu0 0
        %757 = vmatpush1.bf16.xpose.msra.mxu0 0
        %758 = vmatprep.subr.bf16.mxu0 0
        %759 = vmatpush1.bf16.xpose.msra.mxu0 0
        %760 = vmatprep.subr.bf16.mxu0 0
        %761 = vmatpush1.bf16.xpose.msra.mxu0 0
        %762 = vmatprep.subr.bf16.mxu0 0
        %763 = vmatpush1.bf16.xpose.msra.mxu0 0
        %764 = vmatprep.subr.bf16.mxu0 0
        %765 = vmatpush1.bf16.xpose.msra.mxu0 0
        %766 = vmatprep.subr.bf16.mxu0 0
        %767 = vmatpush1.bf16.xpose.msra.mxu0 0
        %768 = vmatprep.subr.bf16.mxu0 0
        %769 = vmatpush1.bf16.xpose.msra.mxu0 0
        %770 = vmatprep.subr.bf16.mxu0 0
        %771 = vmatpush1.bf16.xpose.msra.mxu0 0
        %772 = vmatprep.subr.bf16.mxu0 0
        %773 = vmatpush1.bf16.xpose.msra.mxu0 0
        %774 = vmatprep.subr.bf16.mxu0 0
        %775 = vmatpush1.bf16.xpose.msra.mxu0 0
        %776 = vmatprep.subr.bf16.mxu0 0
        %777 = vmatpush1.bf16.xpose.msra.mxu0 0
        %778 = vmatprep.mubr.bf16.mxu0 0
        %779 = vmatmul.mubr.bf16.gmra.mrb[0].mxu0 %v741
        %v780 = vpop.f32.mrb[0].mxu0
        %v781 = vadd.f32 %v731, %v780
        %v782 = vpop.f32.mrb[0].mxu0
        %v783 = vpop.f32.mrb[0].mxu0
        %v784 = vpop.f32.mrb[0].mxu0
        %785 = vdwg.mxu0
        %786 = vrot.lane.b32.xlu0 %v736, 96
        %v787 = vpop.permute.xlu0 %786
        %v789 = vsel %vm739, %v736, 0
        %v792 = vsel %vm739, %v787, 0
        %794 = vmatprep.subr.bf16.mxu0 0
        %795 = vmatpush1.bf16.xpose.msra.mxu0 %v792
        %796 = vmatprep.subr.bf16.mxu0 0
        %797 = vmatpush1.bf16.xpose.msra.mxu0 0
        %798 = vmatprep.subr.bf16.mxu0 0
        %799 = vmatpush1.bf16.xpose.msra.mxu0 0
        %800 = vmatprep.subr.bf16.mxu0 0
        %801 = vmatpush1.bf16.xpose.msra.mxu0 0
        %802 = vmatprep.subr.bf16.mxu0 0
        %803 = vmatpush1.bf16.xpose.msra.mxu0 0
        %804 = vmatprep.subr.bf16.mxu0 0
        %805 = vmatpush1.bf16.xpose.msra.mxu0 0
        %806 = vmatprep.subr.bf16.mxu0 0
        %807 = vmatpush1.bf16.xpose.msra.mxu0 0
        %808 = vmatprep.subr.bf16.mxu0 0
        %809 = vmatpush1.bf16.xpose.msra.mxu0 0
        %810 = vmatprep.subr.bf16.mxu0 0
        %811 = vmatpush1.bf16.xpose.msra.mxu0 0
        %812 = vmatprep.subr.bf16.mxu0 0
        %813 = vmatpush1.bf16.xpose.msra.mxu0 0
        %814 = vmatprep.subr.bf16.mxu0 0
        %815 = vmatpush1.bf16.xpose.msra.mxu0 0
        %816 = vmatprep.subr.bf16.mxu0 0
        %817 = vmatpush1.bf16.xpose.msra.mxu0 0
        %818 = vmatprep.subr.bf16.mxu0 0
        %819 = vmatpush1.bf16.xpose.msra.mxu0 0
        %820 = vmatprep.subr.bf16.mxu0 0
        %821 = vmatpush1.bf16.xpose.msra.mxu0 0
        %822 = vmatprep.subr.bf16.mxu0 0
        %823 = vmatpush1.bf16.xpose.msra.mxu0 0
        %824 = vmatprep.subr.bf16.mxu0 0
        %825 = vmatpush1.bf16.xpose.msra.mxu0 0
        %826 = vmatprep.mubr.bf16.mxu0 0
        %827 = vmatmul.mubr.bf16.gmra.mrb[0].mxu0 %v789
        %v828 = vpop.f32.mrb[0].mxu0
        %v829 = vadd.f32 %v731, %v828
        %v830 = vpop.f32.mrb[0].mxu0
        %v831 = vpop.f32.mrb[0].mxu0
        %v832 = vpop.f32.mrb[0].mxu0
        %833 = vdwg.mxu0
        %v834 = vsel %vm739, %v781, -inf
        %835 = vmax.xlane.f32.xlu0 %v834
        %v836 = vpop.xlane.xlu0 %835
        %v837 = vsel %vm739, %v829, -inf
        %838 = vmax.xlane.f32.xlu0 %v837
        %v839 = vpop.xlane.xlu0 %838
        %v840 = vsub.f32 %v781, %v836
        %v841 = vsub.f32 %v829, %v839
        %v842 = vmul.f32 %v840, 1.442695
        %v843 = vpow.pop %v842
        %v844 = vmul.f32 %v841, 1.442695
        %v845 = vpow.pop %v844
        %v846 = vsel %vm739, %v843, 0.0
        %847 = vadd.xlane.f32.xlu0 %v846
        %v848 = vpop.xlane.xlu0 %847
        %v849 = vsel %vm739, %v845, 0.0
        %850 = vadd.xlane.f32.xlu0 %v849
        %v851 = vpop.xlane.xlu0 %850
        %v852 = vrcp.pop %v848
        %v853 = vrcp.pop %v851
        %v854 = vmul.f32 %v843, %v852
        %v855 = vmul.f32 %v845, %v853
        %v856 = vpack.c.bf16 %v854, %v854
        %v857 = vpack.c.bf16 %v855, %v855
        %858 = vrot.lane.b32.xlu0 %v735, 64
        %v859 = vpop.permute.xlu0 %858
        %v861 = vsel %vm739, %v856, 0
        %vm863 = vcmask 1043456
        %v865 = vsel %vm863, %v859, 0
        %867 = vmatprep.subr.bf16.mxu0 0
        %868 = vmatpush1.bf16.msra.mxu0 %v865
        %869 = vmatprep.subr.bf16.mxu0 0
        %870 = vmatpush1.bf16.msra.mxu0 0
        %871 = vmatprep.subr.bf16.mxu0 0
        %872 = vmatpush1.bf16.msra.mxu0 0
        %873 = vmatprep.subr.bf16.mxu0 0
        %874 = vmatpush1.bf16.msra.mxu0 0
        %875 = vmatprep.subr.bf16.mxu0 0
        %876 = vmatpush1.bf16.msra.mxu0 0
        %877 = vmatprep.subr.bf16.mxu0 0
        %878 = vmatpush1.bf16.msra.mxu0 0
        %879 = vmatprep.subr.bf16.mxu0 0
        %880 = vmatpush1.bf16.msra.mxu0 0
        %881 = vmatprep.subr.bf16.mxu0 0
        %882 = vmatpush1.bf16.msra.mxu0 0
        %883 = vmatprep.subr.bf16.mxu0 0
        %884 = vmatpush1.bf16.msra.mxu0 0
        %885 = vmatprep.subr.bf16.mxu0 0
        %886 = vmatpush1.bf16.msra.mxu0 0
        %887 = vmatprep.subr.bf16.mxu0 0
        %888 = vmatpush1.bf16.msra.mxu0 0
        %889 = vmatprep.subr.bf16.mxu0 0
        %890 = vmatpush1.bf16.msra.mxu0 0
        %891 = vmatprep.subr.bf16.mxu0 0
        %892 = vmatpush1.bf16.msra.mxu0 0
        %893 = vmatprep.subr.bf16.mxu0 0
        %894 = vmatpush1.bf16.msra.mxu0 0
        %895 = vmatprep.subr.bf16.mxu0 0
        %896 = vmatpush1.bf16.msra.mxu0 0
        %897 = vmatprep.subr.bf16.mxu0 0
        %898 = vmatpush1.bf16.msra.mxu0 0
        %899 = vmatprep.mubr.bf16.mxu0 0
        %900 = vmatmul.mubr.bf16.gmra.mrb[0].mxu0 %v861
        %v901 = vpop.f32.mrb[0].mxu0
        %v902 = vadd.f32 0.0, %v901
        %v903 = vpop.f32.mrb[0].mxu0
        %v904 = vpop.f32.mrb[0].mxu0
        %v905 = vpop.f32.mrb[0].mxu0
        %906 = vdwg.mxu0
        %907 = vrot.lane.b32.xlu0 %v736, 64
        %v908 = vpop.permute.xlu0 %907
        %v910 = vsel %vm739, %v857, 0
        %v913 = vsel %vm863, %v908, 0
        %915 = vmatprep.subr.bf16.mxu0 0
        %916 = vmatpush1.bf16.msra.mxu0 %v913
        %917 = vmatprep.subr.bf16.mxu0 0
        %918 = vmatpush1.bf16.msra.mxu0 0
        %919 = vmatprep.subr.bf16.mxu0 0
        %920 = vmatpush1.bf16.msra.mxu0 0
        %921 = vmatprep.subr.bf16.mxu0 0
        %922 = vmatpush1.bf16.msra.mxu0 0
        %923 = vmatprep.subr.bf16.mxu0 0
        %924 = vmatpush1.bf16.msra.mxu0 0
        %925 = vmatprep.subr.bf16.mxu0 0
        %926 = vmatpush1.bf16.msra.mxu0 0
        %927 = vmatprep.subr.bf16.mxu0 0
        %928 = vmatpush1.bf16.msra.mxu0 0
        %929 = vmatprep.subr.bf16.mxu0 0
        %930 = vmatpush1.bf16.msra.mxu0 0
        %931 = vmatprep.subr.bf16.mxu0 0
        %932 = vmatpush1.bf16.msra.mxu0 0
        %933 = vmatprep.subr.bf16.mxu0 0
        %934 = vmatpush1.bf16.msra.mxu0 0
        %935 = vmatprep.subr.bf16.mxu0 0
        %936 = vmatpush1.bf16.msra.mxu0 0
        %937 = vmatprep.subr.bf16.mxu0 0
        %938 = vmatpush1.bf16.msra.mxu0 0
        %939 = vmatprep.subr.bf16.mxu0 0
        %940 = vmatpush1.bf16.msra.mxu0 0
        %941 = vmatprep.subr.bf16.mxu0 0
        %942 = vmatpush1.bf16.msra.mxu0 0
        %943 = vmatprep.subr.bf16.mxu0 0
        %944 = vmatpush1.bf16.msra.mxu0 0
        %945 = vmatprep.subr.bf16.mxu0 0
        %946 = vmatpush1.bf16.msra.mxu0 0
        %947 = vmatprep.mubr.bf16.mxu0 0
        %948 = vmatmul.mubr.bf16.gmra.mrb[0].mxu0 %v910
        %v949 = vpop.f32.mrb[0].mxu0
        %v950 = vadd.f32 0.0, %v949
        %v951 = vpop.f32.mrb[0].mxu0
        %v952 = vpop.f32.mrb[0].mxu0
        %v953 = vpop.f32.mrb[0].mxu0
        %954 = vdwg.mxu0
        %955 = vrot.lane.b32.xlu0 %v735, 120
        %v956 = vpop.permute.xlu0 %955
        %957 = vrot.lane.b32.xlu0 %v735, 88
        %v958 = vpop.permute.xlu0 %957
        %v960 = vsel %vm739, %v956, 0
        %v963 = vsel %vm739, %v958, 0
        %965 = vmatprep.subr.bf16.mxu0 0
        %966 = vmatpush1.bf16.xpose.msra.mxu0 %v963
        %967 = vmatprep.subr.bf16.mxu0 0
        %968 = vmatpush1.bf16.xpose.msra.mxu0 0
        %969 = vmatprep.subr.bf16.mxu0 0
        %970 = vmatpush1.bf16.xpose.msra.mxu0 0
        %971 = vmatprep.subr.bf16.mxu0 0
        %972 = vmatpush1.bf16.xpose.msra.mxu0 0
        %973 = vmatprep.subr.bf16.mxu0 0
        %974 = vmatpush1.bf16.xpose.msra.mxu0 0
        %975 = vmatprep.subr.bf16.mxu0 0
        %976 = vmatpush1.bf16.xpose.msra.mxu0 0
        %977 = vmatprep.subr.bf16.mxu0 0
        %978 = vmatpush1.bf16.xpose.msra.mxu0 0
        %979 = vmatprep.subr.bf16.mxu0 0
        %980 = vmatpush1.bf16.xpose.msra.mxu0 0
        %981 = vmatprep.subr.bf16.mxu0 0
        %982 = vmatpush1.bf16.xpose.msra.mxu0 0
        %983 = vmatprep.subr.bf16.mxu0 0
        %984 = vmatpush1.bf16.xpose.msra.mxu0 0
        %985 = vmatprep.subr.bf16.mxu0 0
        %986 = vmatpush1.bf16.xpose.msra.mxu0 0
        %987 = vmatprep.subr.bf16.mxu0 0
        %988 = vmatpush1.bf16.xpose.msra.mxu0 0
        %989 = vmatprep.subr.bf16.mxu0 0
        %990 = vmatpush1.bf16.xpose.msra.mxu0 0
        %991 = vmatprep.subr.bf16.mxu0 0
        %992 = vmatpush1.bf16.xpose.msra.mxu0 0
        %993 = vmatprep.subr.bf16.mxu0 0
        %994 = vmatpush1.bf16.xpose.msra.mxu0 0
        %995 = vmatprep.subr.bf16.mxu0 0
        %996 = vmatpush1.bf16.xpose.msra.mxu0 0
        %997 = vmatprep.mubr.bf16.mxu0 0
        %998 = vmatmul.mubr.bf16.gmra.mrb[0].mxu0 %v960
        %v999 = vpop.f32.mrb[0].mxu0
        %v1000 = vadd.f32 %v731, %v999
        %v1001 = vpop.f32.mrb[0].mxu0
        %v1002 = vpop.f32.mrb[0].mxu0
        %v1003 = vpop.f32.mrb[0].mxu0
        %1004 = vdwg.mxu0
        %1005 = vrot.lane.b32.xlu0 %v736, 120
        %v1006 = vpop.permute.xlu0 %1005
        %1007 = vrot.lane.b32.xlu0 %v736, 88
        %v1008 = vpop.permute.xlu0 %1007
        %v1010 = vsel %vm739, %v1006, 0
        %v1013 = vsel %vm739, %v1008, 0
        %1015 = vmatprep.subr.bf16.mxu0 0
        %1016 = vmatpush1.bf16.xpose.msra.mxu0 %v1013
        %1017 = vmatprep.subr.bf16.mxu0 0
        %1018 = vmatpush1.bf16.xpose.msra.mxu0 0
        %1019 = vmatprep.subr.bf16.mxu0 0
        %1020 = vmatpush1.bf16.xpose.msra.mxu0 0
        %1021 = vmatprep.subr.bf16.mxu0 0
        %1022 = vmatpush1.bf16.xpose.msra.mxu0 0
        %1023 = vmatprep.subr.bf16.mxu0 0
        %1024 = vmatpush1.bf16.xpose.msra.mxu0 0
        %1025 = vmatprep.subr.bf16.mxu0 0
        %1026 = vmatpush1.bf16.xpose.msra.mxu0 0
        %1027 = vmatprep.subr.bf16.mxu0 0
        %1028 = vmatpush1.bf16.xpose.msra.mxu0 0
        %1029 = vmatprep.subr.bf16.mxu0 0
        %1030 = vmatpush1.bf16.xpose.msra.mxu0 0
        %1031 = vmatprep.subr.bf16.mxu0 0
        %1032 = vmatpush1.bf16.xpose.msra.mxu0 0
        %1033 = vmatprep.subr.bf16.mxu0 0
        %1034 = vmatpush1.bf16.xpose.msra.mxu0 0
        %1035 = vmatprep.subr.bf16.mxu0 0
        %1036 = vmatpush1.bf16.xpose.msra.mxu0 0
        %1037 = vmatprep.subr.bf16.mxu0 0
        %1038 = vmatpush1.bf16.xpose.msra.mxu0 0
        %1039 = vmatprep.subr.bf16.mxu0 0
        %1040 = vmatpush1.bf16.xpose.msra.mxu0 0
        %1041 = vmatprep.subr.bf16.mxu0 0
        %1042 = vmatpush1.bf16.xpose.msra.mxu0 0
        %1043 = vmatprep.subr.bf16.mxu0 0
        %1044 = vmatpush1.bf16.xpose.msra.mxu0 0
        %1045 = vmatprep.subr.bf16.mxu0 0
        %1046 = vmatpush1.bf16.xpose.msra.mxu0 0
        %1047 = vmatprep.mubr.bf16.mxu0 0
        %1048 = vmatmul.mubr.bf16.gmra.mrb[0].mxu0 %v1010
        %v1049 = vpop.f32.mrb[0].mxu0
        %v1050 = vadd.f32 %v731, %v1049
        %v1051 = vpop.f32.mrb[0].mxu0
        %v1052 = vpop.f32.mrb[0].mxu0
        %v1053 = vpop.f32.mrb[0].mxu0
        %1054 = vdwg.mxu0
        %v1055 = vsel %vm739, %v1000, -inf
        %1056 = vmax.xlane.f32.xlu0 %v1055
        %v1057 = vpop.xlane.xlu0 %1056
        %v1058 = vsel %vm739, %v1050, -inf
        %1059 = vmax.xlane.f32.xlu0 %v1058
        %v1060 = vpop.xlane.xlu0 %1059
        %v1061 = vsub.f32 %v1000, %v1057
        %v1062 = vsub.f32 %v1050, %v1060
        %v1063 = vmul.f32 %v1061, 1.442695
        %v1064 = vpow.pop %v1063
        %v1065 = vmul.f32 %v1062, 1.442695
        %v1066 = vpow.pop %v1065
        %v1067 = vsel %vm739, %v1064, 0.0
        %1068 = vadd.xlane.f32.xlu0 %v1067
        %v1069 = vpop.xlane.xlu0 %1068
        %v1070 = vsel %vm739, %v1066, 0.0
        %1071 = vadd.xlane.f32.xlu0 %v1070
        %v1072 = vpop.xlane.xlu0 %1071
        %v1073 = vrcp.pop %v1069
        %v1074 = vrcp.pop %v1072
        %v1075 = vmul.f32 %v1064, %v1073
        %v1076 = vmul.f32 %v1066, %v1074
        %v1077 = vpack.c.bf16 %v1075, %v1075
        %v1078 = vpack.c.bf16 %v1076, %v1076
        %1079 = vrot.lane.b32.xlu0 %v735, 56
        %v1080 = vpop.permute.xlu0 %1079
        %v1082 = vsel %vm739, %v1077, 0
        %v1085 = vsel %vm863, %v1080, 0
        %1087 = vmatprep.subr.bf16.mxu0 0
        %1088 = vmatpush1.bf16.msra.mxu0 %v1085
        %1089 = vmatprep.subr.bf16.mxu0 0
        %1090 = vmatpush1.bf16.msra.mxu0 0
        %1091 = vmatprep.subr.bf16.mxu0 0
        %1092 = vmatpush1.bf16.msra.mxu0 0
        %1093 = vmatprep.subr.bf16.mxu0 0
        %1094 = vmatpush1.bf16.msra.mxu0 0
        %1095 = vmatprep.subr.bf16.mxu0 0
        %1096 = vmatpush1.bf16.msra.mxu0 0
        %1097 = vmatprep.subr.bf16.mxu0 0
        %1098 = vmatpush1.bf16.msra.mxu0 0
        %1099 = vmatprep.subr.bf16.mxu0 0
        %1100 = vmatpush1.bf16.msra.mxu0 0
        %1101 = vmatprep.subr.bf16.mxu0 0
        %1102 = vmatpush1.bf16.msra.mxu0 0
        %1103 = vmatprep.subr.bf16.mxu0 0
        %1104 = vmatpush1.bf16.msra.mxu0 0
        %1105 = vmatprep.subr.bf16.mxu0 0
        %1106 = vmatpush1.bf16.msra.mxu0 0
        %1107 = vmatprep.subr.bf16.mxu0 0
        %1108 = vmatpush1.bf16.msra.mxu0 0
        %1109 = vmatprep.subr.bf16.mxu0 0
        %1110 = vmatpush1.bf16.msra.mxu0 0
        %1111 = vmatprep.subr.bf16.mxu0 0
        %1112 = vmatpush1.bf16.msra.mxu0 0
        %1113 = vmatprep.subr.bf16.mxu0 0
        %1114 = vmatpush1.bf16.msra.mxu0 0
        %1115 = vmatprep.subr.bf16.mxu0 0
        %1116 = vmatpush1.bf16.msra.mxu0 0
        %1117 = vmatprep.subr.bf16.mxu0 0
        %1118 = vmatpush1.bf16.msra.mxu0 0
        %1119 = vmatprep.mubr.bf16.mxu0 0
        %1120 = vmatmul.mubr.bf16.gmra.mrb[0].mxu0 %v1082
        %v1121 = vpop.f32.mrb[0].mxu0
        %v1122 = vadd.f32 0.0, %v1121
        %v1123 = vpop.f32.mrb[0].mxu0
        %v1124 = vpop.f32.mrb[0].mxu0
        %v1125 = vpop.f32.mrb[0].mxu0
        %1126 = vdwg.mxu0
        %1127 = vrot.lane.b32.xlu0 %v736, 56
        %v1128 = vpop.permute.xlu0 %1127
        %v1130 = vsel %vm739, %v1078, 0
        %v1133 = vsel %vm863, %v1128, 0
        %1135 = vmatprep.subr.bf16.mxu0 0
        %1136 = vmatpush1.bf16.msra.mxu0 %v1133
        %1137 = vmatprep.subr.bf16.mxu0 0
        %1138 = vmatpush1.bf16.msra.mxu0 0
        %1139 = vmatprep.subr.bf16.mxu0 0
        %1140 = vmatpush1.bf16.msra.mxu0 0
        %1141 = vmatprep.subr.bf16.mxu0 0
        %1142 = vmatpush1.bf16.msra.mxu0 0
        %1143 = vmatprep.subr.bf16.mxu0 0
        %1144 = vmatpush1.bf16.msra.mxu0 0
        %1145 = vmatprep.subr.bf16.mxu0 0
        %1146 = vmatpush1.bf16.msra.mxu0 0
        %1147 = vmatprep.subr.bf16.mxu0 0
        %1148 = vmatpush1.bf16.msra.mxu0 0
        %1149 = vmatprep.subr.bf16.mxu0 0
        %1150 = vmatpush1.bf16.msra.mxu0 0
        %1151 = vmatprep.subr.bf16.mxu0 0
        %1152 = vmatpush1.bf16.msra.mxu0 0
        %1153 = vmatprep.subr.bf16.mxu0 0
        %1154 = vmatpush1.bf16.msra.mxu0 0
        %1155 = vmatprep.subr.bf16.mxu0 0
        %1156 = vmatpush1.bf16.msra.mxu0 0
        %1157 = vmatprep.subr.bf16.mxu0 0
        %1158 = vmatpush1.bf16.msra.mxu0 0
        %1159 = vmatprep.subr.bf16.mxu0 0
        %1160 = vmatpush1.bf16.msra.mxu0 0
        %1161 = vmatprep.subr.bf16.mxu0 0
        %1162 = vmatpush1.bf16.msra.mxu0 0
        %1163 = vmatprep.subr.bf16.mxu0 0
        %1164 = vmatpush1.bf16.msra.mxu0 0
        %1165 = vmatprep.subr.bf16.mxu0 0
        %1166 = vmatpush1.bf16.msra.mxu0 0
        %1167 = vmatprep.mubr.bf16.mxu0 0
        %1168 = vmatmul.mubr.bf16.gmra.mrb[0].mxu0 %v1130
        %v1169 = vpop.f32.mrb[0].mxu0
        %v1170 = vadd.f32 0.0, %v1169
        %v1171 = vpop.f32.mrb[0].mxu0
        %v1172 = vpop.f32.mrb[0].mxu0
        %v1173 = vpop.f32.mrb[0].mxu0
        %1174 = vdwg.mxu0
        %1175 = vrot.lane.b32.xlu0 %v735, 112
        %v1176 = vpop.permute.xlu0 %1175
        %1177 = vrot.lane.b32.xlu0 %v735, 80
        %v1178 = vpop.permute.xlu0 %1177
        %v1180 = vsel %vm739, %v1176, 0
        %v1183 = vsel %vm739, %v1178, 0
        %1185 = vmatprep.subr.bf16.mxu0 0
        %1186 = vmatpush1.bf16.xpose.msra.mxu0 %v1183
        %1187 = vmatprep.subr.bf16.mxu0 0
        %1188 = vmatpush1.bf16.xpose.msra.mxu0 0
        %1189 = vmatprep.subr.bf16.mxu0 0
        %1190 = vmatpush1.bf16.xpose.msra.mxu0 0
        %1191 = vmatprep.subr.bf16.mxu0 0
        %1192 = vmatpush1.bf16.xpose.msra.mxu0 0
        %1193 = vmatprep.subr.bf16.mxu0 0
        %1194 = vmatpush1.bf16.xpose.msra.mxu0 0
        %1195 = vmatprep.subr.bf16.mxu0 0
        %1196 = vmatpush1.bf16.xpose.msra.mxu0 0
        %1197 = vmatprep.subr.bf16.mxu0 0
        %1198 = vmatpush1.bf16.xpose.msra.mxu0 0
        %1199 = vmatprep.subr.bf16.mxu0 0
        %1200 = vmatpush1.bf16.xpose.msra.mxu0 0
        %1201 = vmatprep.subr.bf16.mxu0 0
        %1202 = vmatpush1.bf16.xpose.msra.mxu0 0
        %1203 = vmatprep.subr.bf16.mxu0 0
        %1204 = vmatpush1.bf16.xpose.msra.mxu0 0
        %1205 = vmatprep.subr.bf16.mxu0 0
        %1206 = vmatpush1.bf16.xpose.msra.mxu0 0
        %1207 = vmatprep.subr.bf16.mxu0 0
        %1208 = vmatpush1.bf16.xpose.msra.mxu0 0
        %1209 = vmatprep.subr.bf16.mxu0 0
        %1210 = vmatpush1.bf16.xpose.msra.mxu0 0
        %1211 = vmatprep.subr.bf16.mxu0 0
        %1212 = vmatpush1.bf16.xpose.msra.mxu0 0
        %1213 = vmatprep.subr.bf16.mxu0 0
        %1214 = vmatpush1.bf16.xpose.msra.mxu0 0
        %1215 = vmatprep.subr.bf16.mxu0 0
        %1216 = vmatpush1.bf16.xpose.msra.mxu0 0
        %1217 = vmatprep.mubr.bf16.mxu0 0
        %1218 = vmatmul.mubr.bf16.gmra.mrb[0].mxu0 %v1180
        %v1219 = vpop.f32.mrb[0].mxu0
        %v1220 = vadd.f32 %v731, %v1219
        %v1221 = vpop.f32.mrb[0].mxu0
        %v1222 = vpop.f32.mrb[0].mxu0
        %v1223 = vpop.f32.mrb[0].mxu0
        %1224 = vdwg.mxu0
        %1225 = vrot.lane.b32.xlu0 %v736, 112
        %v1226 = vpop.permute.xlu0 %1225
        %1227 = vrot.lane.b32.xlu0 %v736, 80
        %v1228 = vpop.permute.xlu0 %1227
        %v1230 = vsel %vm739, %v1226, 0
        %v1233 = vsel %vm739, %v1228, 0
        %1235 = vmatprep.subr.bf16.mxu0 0
        %1236 = vmatpush1.bf16.xpose.msra.mxu0 %v1233
        %1237 = vmatprep.subr.bf16.mxu0 0
        %1238 = vmatpush1.bf16.xpose.msra.mxu0 0
        %1239 = vmatprep.subr.bf16.mxu0 0
        %1240 = vmatpush1.bf16.xpose.msra.mxu0 0
        %1241 = vmatprep.subr.bf16.mxu0 0
        %1242 = vmatpush1.bf16.xpose.msra.mxu0 0
        %1243 = vmatprep.subr.bf16.mxu0 0
        %1244 = vmatpush1.bf16.xpose.msra.mxu0 0
        %1245 = vmatprep.subr.bf16.mxu0 0
        %1246 = vmatpush1.bf16.xpose.msra.mxu0 0
        %1247 = vmatprep.subr.bf16.mxu0 0
        %1248 = vmatpush1.bf16.xpose.msra.mxu0 0
        %1249 = vmatprep.subr.bf16.mxu0 0
        %1250 = vmatpush1.bf16.xpose.msra.mxu0 0
        %1251 = vmatprep.subr.bf16.mxu0 0
        %1252 = vmatpush1.bf16.xpose.msra.mxu0 0
        %1253 = vmatprep.subr.bf16.mxu0 0
        %1254 = vmatpush1.bf16.xpose.msra.mxu0 0
        %1255 = vmatprep.subr.bf16.mxu0 0
        %1256 = vmatpush1.bf16.xpose.msra.mxu0 0
        %1257 = vmatprep.subr.bf16.mxu0 0
        %1258 = vmatpush1.bf16.xpose.msra.mxu0 0
        %1259 = vmatprep.subr.bf16.mxu0 0
        %1260 = vmatpush1.bf16.xpose.msra.mxu0 0
        %1261 = vmatprep.subr.bf16.mxu0 0
        %1262 = vmatpush1.bf16.xpose.msra.mxu0 0
        %1263 = vmatprep.subr.bf16.mxu0 0
        %1264 = vmatpush1.bf16.xpose.msra.mxu0 0
        %1265 = vmatprep.subr.bf16.mxu0 0
        %1266 = vmatpush1.bf16.xpose.msra.mxu0 0
        %1267 = vmatprep.mubr.bf16.mxu0 0
        %1268 = vmatmul.mubr.bf16.gmra.mrb[0].mxu0 %v1230
        %v1269 = vpop.f32.mrb[0].mxu0
        %v1270 = vadd.f32 %v731, %v1269
        %v1271 = vpop.f32.mrb[0].mxu0
        %v1272 = vpop.f32.mrb[0].mxu0
        %v1273 = vpop.f32.mrb[0].mxu0
        %1274 = vdwg.mxu0
        %v1275 = vsel %vm739, %v1220, -inf
        %1276 = vmax.xlane.f32.xlu0 %v1275
        %v1277 = vpop.xlane.xlu0 %1276
        %v1278 = vsel %vm739, %v1270, -inf
        %1279 = vmax.xlane.f32.xlu0 %v1278
        %v1280 = vpop.xlane.xlu0 %1279
        %v1281 = vsub.f32 %v1220, %v1277
        %v1282 = vsub.f32 %v1270, %v1280
        %v1283 = vmul.f32 %v1281, 1.442695
        %v1284 = vpow.pop %v1283
        %v1285 = vmul.f32 %v1282, 1.442695
        %v1286 = vpow.pop %v1285
        %v1287 = vsel %vm739, %v1284, 0.0
        %1288 = vadd.xlane.f32.xlu0 %v1287
        %v1289 = vpop.xlane.xlu0 %1288
        %v1290 = vsel %vm739, %v1286, 0.0
        %1291 = vadd.xlane.f32.xlu0 %v1290
        %v1292 = vpop.xlane.xlu0 %1291
        %v1293 = vrcp.pop %v1289
        %v1294 = vrcp.pop %v1292
        %v1295 = vmul.f32 %v1284, %v1293
        %v1296 = vmul.f32 %v1286, %v1294
        %v1297 = vpack.c.bf16 %v1295, %v1295
        %v1298 = vpack.c.bf16 %v1296, %v1296
        %1299 = vrot.lane.b32.xlu0 %v735, 48
        %v1300 = vpop.permute.xlu0 %1299
        %v1302 = vsel %vm739, %v1297, 0
        %v1305 = vsel %vm863, %v1300, 0
        %1307 = vmatprep.subr.bf16.mxu0 0
        %1308 = vmatpush1.bf16.msra.mxu0 %v1305
        %1309 = vmatprep.subr.bf16.mxu0 0
        %1310 = vmatpush1.bf16.msra.mxu0 0
        %1311 = vmatprep.subr.bf16.mxu0 0
        %1312 = vmatpush1.bf16.msra.mxu0 0
        %1313 = vmatprep.subr.bf16.mxu0 0
        %1314 = vmatpush1.bf16.msra.mxu0 0
        %1315 = vmatprep.subr.bf16.mxu0 0
        %1316 = vmatpush1.bf16.msra.mxu0 0
        %1317 = vmatprep.subr.bf16.mxu0 0
        %1318 = vmatpush1.bf16.msra.mxu0 0
        %1319 = vmatprep.subr.bf16.mxu0 0
        %1320 = vmatpush1.bf16.msra.mxu0 0
        %1321 = vmatprep.subr.bf16.mxu0 0
        %1322 = vmatpush1.bf16.msra.mxu0 0
        %1323 = vmatprep.subr.bf16.mxu0 0
        %1324 = vmatpush1.bf16.msra.mxu0 0
        %1325 = vmatprep.subr.bf16.mxu0 0
        %1326 = vmatpush1.bf16.msra.mxu0 0
        %1327 = vmatprep.subr.bf16.mxu0 0
        %1328 = vmatpush1.bf16.msra.mxu0 0
        %1329 = vmatprep.subr.bf16.mxu0 0
        %1330 = vmatpush1.bf16.msra.mxu0 0
        %1331 = vmatprep.subr.bf16.mxu0 0
        %1332 = vmatpush1.bf16.msra.mxu0 0
        %1333 = vmatprep.subr.bf16.mxu0 0
        %1334 = vmatpush1.bf16.msra.mxu0 0
        %1335 = vmatprep.subr.bf16.mxu0 0
        %1336 = vmatpush1.bf16.msra.mxu0 0
        %1337 = vmatprep.subr.bf16.mxu0 0
        %1338 = vmatpush1.bf16.msra.mxu0 0
        %1339 = vmatprep.mubr.bf16.mxu0 0
        %1340 = vmatmul.mubr.bf16.gmra.mrb[0].mxu0 %v1302
        %v1341 = vpop.f32.mrb[0].mxu0
        %v1342 = vadd.f32 0.0, %v1341
        %v1343 = vpop.f32.mrb[0].mxu0
        %v1344 = vpop.f32.mrb[0].mxu0
        %v1345 = vpop.f32.mrb[0].mxu0
        %1346 = vdwg.mxu0
        %1347 = vrot.lane.b32.xlu0 %v736, 48
        %v1348 = vpop.permute.xlu0 %1347
        %v1350 = vsel %vm739, %v1298, 0
        %v1353 = vsel %vm863, %v1348, 0
        %1355 = vmatprep.subr.bf16.mxu0 0
        %1356 = vmatpush1.bf16.msra.mxu0 %v1353
        %1357 = vmatprep.subr.bf16.mxu0 0
        %1358 = vmatpush1.bf16.msra.mxu0 0
        %1359 = vmatprep.subr.bf16.mxu0 0
        %1360 = vmatpush1.bf16.msra.mxu0 0
        %1361 = vmatprep.subr.bf16.mxu0 0
        %1362 = vmatpush1.bf16.msra.mxu0 0
        %1363 = vmatprep.subr.bf16.mxu0 0
        %1364 = vmatpush1.bf16.msra.mxu0 0
        %1365 = vmatprep.subr.bf16.mxu0 0
        %1366 = vmatpush1.bf16.msra.mxu0 0
        %1367 = vmatprep.subr.bf16.mxu0 0
        %1368 = vmatpush1.bf16.msra.mxu0 0
        %1369 = vmatprep.subr.bf16.mxu0 0
        %1370 = vmatpush1.bf16.msra.mxu0 0
        %1371 = vmatprep.subr.bf16.mxu0 0
        %1372 = vmatpush1.bf16.msra.mxu0 0
        %1373 = vmatprep.subr.bf16.mxu0 0
        %1374 = vmatpush1.bf16.msra.mxu0 0
        %1375 = vmatprep.subr.bf16.mxu0 0
        %1376 = vmatpush1.bf16.msra.mxu0 0
        %1377 = vmatprep.subr.bf16.mxu0 0
        %1378 = vmatpush1.bf16.msra.mxu0 0
        %1379 = vmatprep.subr.bf16.mxu0 0
        %1380 = vmatpush1.bf16.msra.mxu0 0
        %1381 = vmatprep.subr.bf16.mxu0 0
        %1382 = vmatpush1.bf16.msra.mxu0 0
        %1383 = vmatprep.subr.bf16.mxu0 0
        %1384 = vmatpush1.bf16.msra.mxu0 0
        %1385 = vmatprep.subr.bf16.mxu0 0
        %1386 = vmatpush1.bf16.msra.mxu0 0
        %1387 = vmatprep.mubr.bf16.mxu0 0
        %1388 = vmatmul.mubr.bf16.gmra.mrb[0].mxu0 %v1350
        %v1389 = vpop.f32.mrb[0].mxu0
        %v1390 = vadd.f32 0.0, %v1389
        %v1391 = vpop.f32.mrb[0].mxu0
        %v1392 = vpop.f32.mrb[0].mxu0
        %v1393 = vpop.f32.mrb[0].mxu0
        %1394 = vdwg.mxu0
        %1395 = vrot.lane.b32.xlu0 %v735, 104
        %v1396 = vpop.permute.xlu0 %1395
        %1397 = vrot.lane.b32.xlu0 %v735, 72
        %v1398 = vpop.permute.xlu0 %1397
        %v1400 = vsel %vm739, %v1396, 0
        %v1403 = vsel %vm739, %v1398, 0
        %1405 = vmatprep.subr.bf16.mxu0 0
        %1406 = vmatpush1.bf16.xpose.msra.mxu0 %v1403
        %1407 = vmatprep.subr.bf16.mxu0 0
        %1408 = vmatpush1.bf16.xpose.msra.mxu0 0
        %1409 = vmatprep.subr.bf16.mxu0 0
        %1410 = vmatpush1.bf16.xpose.msra.mxu0 0
        %1411 = vmatprep.subr.bf16.mxu0 0
        %1412 = vmatpush1.bf16.xpose.msra.mxu0 0
        %1413 = vmatprep.subr.bf16.mxu0 0
        %1414 = vmatpush1.bf16.xpose.msra.mxu0 0
        %1415 = vmatprep.subr.bf16.mxu0 0
        %1416 = vmatpush1.bf16.xpose.msra.mxu0 0
        %1417 = vmatprep.subr.bf16.mxu0 0
        %1418 = vmatpush1.bf16.xpose.msra.mxu0 0
        %1419 = vmatprep.subr.bf16.mxu0 0
        %1420 = vmatpush1.bf16.xpose.msra.mxu0 0
        %1421 = vmatprep.subr.bf16.mxu0 0
        %1422 = vmatpush1.bf16.xpose.msra.mxu0 0
        %1423 = vmatprep.subr.bf16.mxu0 0
        %1424 = vmatpush1.bf16.xpose.msra.mxu0 0
        %1425 = vmatprep.subr.bf16.mxu0 0
        %1426 = vmatpush1.bf16.xpose.msra.mxu0 0
        %1427 = vmatprep.subr.bf16.mxu0 0
        %1428 = vmatpush1.bf16.xpose.msra.mxu0 0
        %1429 = vmatprep.subr.bf16.mxu0 0
        %1430 = vmatpush1.bf16.xpose.msra.mxu0 0
        %1431 = vmatprep.subr.bf16.mxu0 0
        %1432 = vmatpush1.bf16.xpose.msra.mxu0 0
        %1433 = vmatprep.subr.bf16.mxu0 0
        %1434 = vmatpush1.bf16.xpose.msra.mxu0 0
        %1435 = vmatprep.subr.bf16.mxu0 0
        %1436 = vmatpush1.bf16.xpose.msra.mxu0 0
        %1437 = vmatprep.mubr.bf16.mxu0 0
        %1438 = vmatmul.mubr.bf16.gmra.mrb[0].mxu0 %v1400
        %v1439 = vpop.f32.mrb[0].mxu0
        %v1440 = vadd.f32 %v731, %v1439
        %v1441 = vpop.f32.mrb[0].mxu0
        %v1442 = vpop.f32.mrb[0].mxu0
        %v1443 = vpop.f32.mrb[0].mxu0
        %1444 = vdwg.mxu0
        %1445 = vrot.lane.b32.xlu0 %v736, 104
        %v1446 = vpop.permute.xlu0 %1445
        %1447 = vrot.lane.b32.xlu0 %v736, 72
        %v1448 = vpop.permute.xlu0 %1447
        %v1450 = vsel %vm739, %v1446, 0
        %v1453 = vsel %vm739, %v1448, 0
        %1455 = vmatprep.subr.bf16.mxu0 0
        %1456 = vmatpush1.bf16.xpose.msra.mxu0 %v1453
        %1457 = vmatprep.subr.bf16.mxu0 0
        %1458 = vmatpush1.bf16.xpose.msra.mxu0 0
        %1459 = vmatprep.subr.bf16.mxu0 0
        %1460 = vmatpush1.bf16.xpose.msra.mxu0 0
        %1461 = vmatprep.subr.bf16.mxu0 0
        %1462 = vmatpush1.bf16.xpose.msra.mxu0 0
        %1463 = vmatprep.subr.bf16.mxu0 0
        %1464 = vmatpush1.bf16.xpose.msra.mxu0 0
        %1465 = vmatprep.subr.bf16.mxu0 0
        %1466 = vmatpush1.bf16.xpose.msra.mxu0 0
        %1467 = vmatprep.subr.bf16.mxu0 0
        %1468 = vmatpush1.bf16.xpose.msra.mxu0 0
        %1469 = vmatprep.subr.bf16.mxu0 0
        %1470 = vmatpush1.bf16.xpose.msra.mxu0 0
        %1471 = vmatprep.subr.bf16.mxu0 0
        %1472 = vmatpush1.bf16.xpose.msra.mxu0 0
        %1473 = vmatprep.subr.bf16.mxu0 0
        %1474 = vmatpush1.bf16.xpose.msra.mxu0 0
        %1475 = vmatprep.subr.bf16.mxu0 0
        %1476 = vmatpush1.bf16.xpose.msra.mxu0 0
        %1477 = vmatprep.subr.bf16.mxu0 0
        %1478 = vmatpush1.bf16.xpose.msra.mxu0 0
        %1479 = vmatprep.subr.bf16.mxu0 0
        %1480 = vmatpush1.bf16.xpose.msra.mxu0 0
        %1481 = vmatprep.subr.bf16.mxu0 0
        %1482 = vmatpush1.bf16.xpose.msra.mxu0 0
        %1483 = vmatprep.subr.bf16.mxu0 0
        %1484 = vmatpush1.bf16.xpose.msra.mxu0 0
        %1485 = vmatprep.subr.bf16.mxu0 0
        %1486 = vmatpush1.bf16.xpose.msra.mxu0 0
        %1487 = vmatprep.mubr.bf16.mxu0 0
        %1488 = vmatmul.mubr.bf16.gmra.mrb[0].mxu0 %v1450
        %v1489 = vpop.f32.mrb[0].mxu0
        %v1490 = vadd.f32 %v731, %v1489
        %v1491 = vpop.f32.mrb[0].mxu0
        %v1492 = vpop.f32.mrb[0].mxu0
        %v1493 = vpop.f32.mrb[0].mxu0
        %1494 = vdwg.mxu0
        %v1495 = vsel %vm739, %v1440, -inf
        %1496 = vmax.xlane.f32.xlu0 %v1495
        %v1497 = vpop.xlane.xlu0 %1496
        %v1498 = vsel %vm739, %v1490, -inf
        %1499 = vmax.xlane.f32.xlu0 %v1498
        %v1500 = vpop.xlane.xlu0 %1499
        %v1501 = vsub.f32 %v1440, %v1497
        %v1502 = vsub.f32 %v1490, %v1500
        %v1503 = vmul.f32 %v1501, 1.442695
        %v1504 = vpow.pop %v1503
        %v1505 = vmul.f32 %v1502, 1.442695
        %v1506 = vpow.pop %v1505
        %v1507 = vsel %vm739, %v1504, 0.0
        %1508 = vadd.xlane.f32.xlu0 %v1507
        %v1509 = vpop.xlane.xlu0 %1508
        %v1510 = vsel %vm739, %v1506, 0.0
        %1511 = vadd.xlane.f32.xlu0 %v1510
        %v1512 = vpop.xlane.xlu0 %1511
        %v1513 = vrcp.pop %v1509
        %v1514 = vrcp.pop %v1512
        %v1515 = vmul.f32 %v1504, %v1513
        %v1516 = vmul.f32 %v1506, %v1514
        %v1517 = vpack.c.bf16 %v1515, %v1515
        %v1518 = vpack.c.bf16 %v1516, %v1516
        %1519 = vrot.lane.b32.xlu0 %v735, 40
        %v1520 = vpop.permute.xlu0 %1519
        %v1522 = vsel %vm739, %v1517, 0
        %v1525 = vsel %vm863, %v1520, 0
        %1527 = vmatprep.subr.bf16.mxu0 0
        %1528 = vmatpush1.bf16.msra.mxu0 %v1525
        %1529 = vmatprep.subr.bf16.mxu0 0
        %1530 = vmatpush1.bf16.msra.mxu0 0
        %1531 = vmatprep.subr.bf16.mxu0 0
        %1532 = vmatpush1.bf16.msra.mxu0 0
        %1533 = vmatprep.subr.bf16.mxu0 0
        %1534 = vmatpush1.bf16.msra.mxu0 0
        %1535 = vmatprep.subr.bf16.mxu0 0
        %1536 = vmatpush1.bf16.msra.mxu0 0
        %1537 = vmatprep.subr.bf16.mxu0 0
        %1538 = vmatpush1.bf16.msra.mxu0 0
        %1539 = vmatprep.subr.bf16.mxu0 0
        %1540 = vmatpush1.bf16.msra.mxu0 0
        %1541 = vmatprep.subr.bf16.mxu0 0
        %1542 = vmatpush1.bf16.msra.mxu0 0
        %1543 = vmatprep.subr.bf16.mxu0 0
        %1544 = vmatpush1.bf16.msra.mxu0 0
        %1545 = vmatprep.subr.bf16.mxu0 0
        %1546 = vmatpush1.bf16.msra.mxu0 0
        %1547 = vmatprep.subr.bf16.mxu0 0
        %1548 = vmatpush1.bf16.msra.mxu0 0
        %1549 = vmatprep.subr.bf16.mxu0 0
        %1550 = vmatpush1.bf16.msra.mxu0 0
        %1551 = vmatprep.subr.bf16.mxu0 0
        %1552 = vmatpush1.bf16.msra.mxu0 0
        %1553 = vmatprep.subr.bf16.mxu0 0
        %1554 = vmatpush1.bf16.msra.mxu0 0
        %1555 = vmatprep.subr.bf16.mxu0 0
        %1556 = vmatpush1.bf16.msra.mxu0 0
        %1557 = vmatprep.subr.bf16.mxu0 0
        %1558 = vmatpush1.bf16.msra.mxu0 0
        %1559 = vmatprep.mubr.bf16.mxu0 0
        %1560 = vmatmul.mubr.bf16.gmra.mrb[0].mxu0 %v1522
        %v1561 = vpop.f32.mrb[0].mxu0
        %v1562 = vadd.f32 0.0, %v1561
        %v1563 = vpop.f32.mrb[0].mxu0
        %v1564 = vpop.f32.mrb[0].mxu0
        %v1565 = vpop.f32.mrb[0].mxu0
        %1566 = vdwg.mxu0
        %1567 = vrot.lane.b32.xlu0 %v736, 40
        %v1568 = vpop.permute.xlu0 %1567
        %v1570 = vsel %vm739, %v1518, 0
        %v1573 = vsel %vm863, %v1568, 0
        %1575 = vmatprep.subr.bf16.mxu0 0
        %1576 = vmatpush1.bf16.msra.mxu0 %v1573
        %1577 = vmatprep.subr.bf16.mxu0 0
        %1578 = vmatpush1.bf16.msra.mxu0 0
        %1579 = vmatprep.subr.bf16.mxu0 0
        %1580 = vmatpush1.bf16.msra.mxu0 0
        %1581 = vmatprep.subr.bf16.mxu0 0
        %1582 = vmatpush1.bf16.msra.mxu0 0
        %1583 = vmatprep.subr.bf16.mxu0 0
        %1584 = vmatpush1.bf16.msra.mxu0 0
        %1585 = vmatprep.subr.bf16.mxu0 0
        %1586 = vmatpush1.bf16.msra.mxu0 0
        %1587 = vmatprep.subr.bf16.mxu0 0
        %1588 = vmatpush1.bf16.msra.mxu0 0
        %1589 = vmatprep.subr.bf16.mxu0 0
        %1590 = vmatpush1.bf16.msra.mxu0 0
        %1591 = vmatprep.subr.bf16.mxu0 0
        %1592 = vmatpush1.bf16.msra.mxu0 0
        %1593 = vmatprep.subr.bf16.mxu0 0
        %1594 = vmatpush1.bf16.msra.mxu0 0
        %1595 = vmatprep.subr.bf16.mxu0 0
        %1596 = vmatpush1.bf16.msra.mxu0 0
        %1597 = vmatprep.subr.bf16.mxu0 0
        %1598 = vmatpush1.bf16.msra.mxu0 0
        %1599 = vmatprep.subr.bf16.mxu0 0
        %1600 = vmatpush1.bf16.msra.mxu0 0
        %1601 = vmatprep.subr.bf16.mxu0 0
        %1602 = vmatpush1.bf16.msra.mxu0 0
        %1603 = vmatprep.subr.bf16.mxu0 0
        %1604 = vmatpush1.bf16.msra.mxu0 0
        %1605 = vmatprep.subr.bf16.mxu0 0
        %1606 = vmatpush1.bf16.msra.mxu0 0
        %1607 = vmatprep.mubr.bf16.mxu0 0
        %1608 = vmatmul.mubr.bf16.gmra.mrb[0].mxu0 %v1570
        %v1609 = vpop.f32.mrb[0].mxu0
        %v1610 = vadd.f32 0.0, %v1609
        %v1611 = vpop.f32.mrb[0].mxu0
        %v1612 = vpop.f32.mrb[0].mxu0
        %v1613 = vpop.f32.mrb[0].mxu0
        %1614 = vdwg.mxu0
        %1617 = vrot.lane.b32.xlu0 %v1122, 8
        %v1618 = vpop.permute.xlu0 %1617
        %1619 = vrot.lane.b32.xlu0 %v1170, 8
        %v1620 = vpop.permute.xlu0 %1619
        %1625 = vrot.lane.b32.xlu0 %v1342, 16
        %v1626 = vpop.permute.xlu0 %1625
        %1627 = vrot.lane.b32.xlu0 %v1390, 16
        %v1628 = vpop.permute.xlu0 %1627
        %1633 = vrot.lane.b32.xlu0 %v1562, 24
        %v1634 = vpop.permute.xlu0 %1633
        %1635 = vrot.lane.b32.xlu0 %v1610, 24
        %v1636 = vpop.permute.xlu0 %1635
        %v1639 = vsel %vm739, %v902, %v1618
        %v1640 = vsel %vm739, %v950, %v1620
        %vm1641 = vcmask 130048
        %v1642 = vsel %vm1641, %v1639, %v1626
        %v1643 = vsel %vm1641, %v1640, %v1628
        %vm1644 = vcmask 195584
        %v1645 = vsel %vm1644, %v1642, %v1634
        %v1646 = vsel %vm1644, %v1643, %v1636
        %v1647 = vpack.c.bf16 %v1646, %v1645
        %v1648 = vld [vmem:[%s573] sm:$0xf]
        %v1649 = vld [vmem:[%s573 + $0x4] sm:$0xf]
        %v1650 = vld [vmem:[%s573 + $0x8] sm:$0xf]
        %v1651 = vld [vmem:[%s573 + $0xc] sm:$0xf]
        %v1652 = vld [vmem:[%s576] sm:$0x1]
        %v1654 = vlaneseq
        %v1655 = vshrl.u32 %v1654, 7
        %v1656 = vsub.s32 0, %v1655
        %v1657 = vrot.slane %v1652, %v1656
        %v1663 = vunpack.c.l.b16 %v1648
        %v1664 = vunpack.c.l.b16 %v1649
        %v1665 = vunpack.c.l.b16 %v1650
        %v1666 = vunpack.c.l.b16 %v1651
        %v1667 = vpack.c.b16 %v1664, %v1663
        %v1668 = vpack.c.b16 %v1666, %v1665
        %v1672 = vsel %vm613, %v1647, 0
        %1674 = vmatprep.subr.bf16.mxu0 0
        %1675 = vmatpush1.bf16.msra.mxu0 %v1667
        %1676 = vmatprep.subr.bf16.mxu0 0
        %1677 = vmatpush1.bf16.msra.mxu0 %v1668
        %1678 = vmatprep.subr.bf16.mxu0 0
        %1679 = vmatpush1.bf16.msra.mxu0 0
        %1680 = vmatprep.subr.bf16.mxu0 0
        %1681 = vmatpush1.bf16.msra.mxu0 0
        %1682 = vmatprep.subr.bf16.mxu0 0
        %1683 = vmatpush1.bf16.msra.mxu0 0
        %1684 = vmatprep.subr.bf16.mxu0 0
        %1685 = vmatpush1.bf16.msra.mxu0 0
        %1686 = vmatprep.subr.bf16.mxu0 0
        %1687 = vmatpush1.bf16.msra.mxu0 0
        %1688 = vmatprep.subr.bf16.mxu0 0
        %1689 = vmatpush1.bf16.msra.mxu0 0
        %1690 = vmatprep.subr.bf16.mxu0 0
        %1691 = vmatpush1.bf16.msra.mxu0 0
        %1692 = vmatprep.subr.bf16.mxu0 0
        %1693 = vmatpush1.bf16.msra.mxu0 0
        %1694 = vmatprep.subr.bf16.mxu0 0
        %1695 = vmatpush1.bf16.msra.mxu0 0
        %1696 = vmatprep.subr.bf16.mxu0 0
        %1697 = vmatpush1.bf16.msra.mxu0 0
        %1698 = vmatprep.subr.bf16.mxu0 0
        %1699 = vmatpush1.bf16.msra.mxu0 0
        %1700 = vmatprep.subr.bf16.mxu0 0
        %1701 = vmatpush1.bf16.msra.mxu0 0
        %1702 = vmatprep.subr.bf16.mxu0 0
        %1703 = vmatpush1.bf16.msra.mxu0 0
        %1704 = vmatprep.subr.bf16.mxu0 0
        %1705 = vmatpush1.bf16.msra.mxu0 0
        %1706 = vmatprep.mubr.bf16.mxu0 0
        %1707 = vmatmul.mubr.bf16.gmra.mrb[0].mxu0 %v1672
        %v1708 = vpop.f32.mrb[0].mxu0
        %v1709 = vadd.f32 %v1657, %v1708
        %v1710 = vpop.f32.mrb[0].mxu0
        %v1711 = vpop.f32.mrb[0].mxu0
        %v1712 = vadd.f32 %v1657, %v1711
        %v1713 = vpop.f32.mrb[0].mxu0
        %1714 = vdwg.mxu0
        %v1715 = vadd.f32 %v609, %v1709
        %v1716 = vadd.f32 %v610, %v1712
        %v1717 = vld [vmem:[%s579] sm:$0x1]
        %v1718 = vld [vmem:[%s582] sm:$0x1]
        %v1719 = vsel %vm613, %v1715, 0.0
        %1720 = vadd.xlane.f32.xlu0 %v1719
        %v1721 = vpop.xlane.xlu0 %1720
        %v1722 = vsel %vm613, %v1716, 0.0
        %1723 = vadd.xlane.f32.xlu0 %v1722
        %v1724 = vpop.xlane.xlu0 %1723
        %v1725 = vmul.f32 %v1721, %v620
        %v1726 = vmul.f32 %v1724, %v620
        %v1727 = vsub.f32 %v1715, %v1725
        %v1728 = vsub.f32 %v1716, %v1726
        %v1729 = vmul.f32 %v1727, %v1727
        %v1730 = vmul.f32 %v1728, %v1728
        %v1731 = vsel %vm613, %v1729, 0.0
        %1732 = vadd.xlane.f32.xlu0 %v1731
        %v1733 = vpop.xlane.xlu0 %1732
        %v1734 = vsel %vm613, %v1730, 0.0
        %1735 = vadd.xlane.f32.xlu0 %v1734
        %v1736 = vpop.xlane.xlu0 %1735
        %v1737 = vmul.f32 %v1733, %v620
        %v1738 = vmul.f32 %v1736, %v620
        %v1739 = vadd.f32 %v1737, 1e-05
        %v1740 = vadd.f32 %v1738, 1e-05
        %v1741 = vrsqrt.pop %v1739
        %v1742 = vrsqrt.pop %v1740
        %v1743 = vmul.f32 %v1727, %v1741
        %v1744 = vmul.f32 %v1728, %v1742
        %v1746 = vlaneseq
        %v1747 = vshrl.u32 %v1746, 7
        %v1748 = vsub.s32 0, %v1747
        %v1749 = vrot.slane %v1717, %v1748
        %v1751 = vmul.f32 %v1743, %v1749
        %v1752 = vmul.f32 %v1744, %v1749
        %v1754 = vlaneseq
        %v1755 = vshrl.u32 %v1754, 7
        %v1756 = vsub.s32 0, %v1755
        %v1757 = vrot.slane %v1718, %v1756
        %v1759 = vadd.f32 %v1751, %v1757
        %v1760 = vadd.f32 %v1752, %v1757
        %v1761 = vpack.c.bf16 %v1760, %v1759
        %v1762 = vld [vmem:[%s587] sm:$0xf]
        %v1763 = vld [vmem:[%s587 + $0x4] sm:$0xf]
        %v1764 = vld [vmem:[%s587 + $0x8] sm:$0xf]
        %v1765 = vld [vmem:[%s587 + $0xc] sm:$0xf]
        %v1766 = vld [vmem:[%s590] sm:$0x1]
        %v1768 = vlaneseq
        %v1769 = vshrl.u32 %v1768, 7
        %v1770 = vsub.s32 0, %v1769
        %v1771 = vrot.slane %v1766, %v1770
        %v1777 = vunpack.c.l.b16 %v1762
        %v1778 = vunpack.c.l.b16 %v1763
        %v1779 = vunpack.c.l.b16 %v1764
        %v1780 = vunpack.c.l.b16 %v1765
        %v1781 = vpack.c.b16 %v1778, %v1777
        %v1782 = vpack.c.b16 %v1780, %v1779
        %v1786 = vsel %vm613, %v1761, 0
        %1788 = vmatprep.subr.bf16.mxu0 0
        %1789 = vmatpush1.bf16.msra.mxu0 %v1781
        %1790 = vmatprep.subr.bf16.mxu0 0
        %1791 = vmatpush1.bf16.msra.mxu0 %v1782
        %1792 = vmatprep.subr.bf16.mxu0 0
        %1793 = vmatpush1.bf16.msra.mxu0 0
        %1794 = vmatprep.subr.bf16.mxu0 0
        %1795 = vmatpush1.bf16.msra.mxu0 0
        %1796 = vmatprep.subr.bf16.mxu0 0
        %1797 = vmatpush1.bf16.msra.mxu0 0
        %1798 = vmatprep.subr.bf16.mxu0 0
        %1799 = vmatpush1.bf16.msra.mxu0 0
        %1800 = vmatprep.subr.bf16.mxu0 0
        %1801 = vmatpush1.bf16.msra.mxu0 0
        %1802 = vmatprep.subr.bf16.mxu0 0
        %1803 = vmatpush1.bf16.msra.mxu0 0
        %1804 = vmatprep.subr.bf16.mxu0 0
        %1805 = vmatpush1.bf16.msra.mxu0 0
        %1806 = vmatprep.subr.bf16.mxu0 0
        %1807 = vmatpush1.bf16.msra.mxu0 0
        %1808 = vmatprep.subr.bf16.mxu0 0
        %1809 = vmatpush1.bf16.msra.mxu0 0
        %1810 = vmatprep.subr.bf16.mxu0 0
        %1811 = vmatpush1.bf16.msra.mxu0 0
        %1812 = vmatprep.subr.bf16.mxu0 0
        %1813 = vmatpush1.bf16.msra.mxu0 0
        %1814 = vmatprep.subr.bf16.mxu0 0
        %1815 = vmatpush1.bf16.msra.mxu0 0
        %1816 = vmatprep.subr.bf16.mxu0 0
        %1817 = vmatpush1.bf16.msra.mxu0 0
        %1818 = vmatprep.subr.bf16.mxu0 0
        %1819 = vmatpush1.bf16.msra.mxu0 0
        %1820 = vmatprep.mubr.bf16.mxu0 0
        %1821 = vmatmul.mubr.bf16.gmra.mrb[0].mxu0 %v1786
        %v1822 = vpop.f32.mrb[0].mxu0
        %v1823 = vadd.f32 %v1771, %v1822
        %v1824 = vpop.f32.mrb[0].mxu0
        %v1825 = vpop.f32.mrb[0].mxu0
        %v1826 = vadd.f32 %v1771, %v1825
        %v1827 = vpop.f32.mrb[0].mxu0
        %1828 = vdwg.mxu0
        %v1829 = vmul.f32 %v1823, -1.702
        %v1830 = vmul.f32 %v1826, -1.702
        %v1831 = vmul.f32 %v1829, 1.442695
        %v1832 = vpow.pop %v1831
        %v1833 = vmul.f32 %v1830, 1.442695
        %v1834 = vpow.pop %v1833
        %v1835 = vadd.f32 %v1832, 1.0
        %v1836 = vadd.f32 %v1834, 1.0
        %v1837 = vrcp.pop %v1835
        %v1838 = vmul.f32 1.0, %v1837
        %v1839 = vrcp.pop %v1836
        %v1840 = vmul.f32 1.0, %v1839
        %v1841 = vmul.f32 %v1823, %v1838
        %v1842 = vmul.f32 %v1826, %v1840
        %v1843 = vpack.c.bf16 %v1842, %v1841
        %v1844 = vld [vmem:[%s595] sm:$0xf]
        %v1845 = vld [vmem:[%s595 + $0x4] sm:$0xf]
        %v1846 = vld [vmem:[%s595 + $0x8] sm:$0xf]
        %v1847 = vld [vmem:[%s595 + $0xc] sm:$0xf]
        %v1848 = vld [vmem:[%s595 + $0x10] sm:$0xf]
        %v1849 = vld [vmem:[%s595 + $0x14] sm:$0xf]
        %v1850 = vld [vmem:[%s595 + $0x18] sm:$0xf]
        %v1851 = vld [vmem:[%s595 + $0x1c] sm:$0xf]
        %v1852 = vld [vmem:[%s595 + $0x20] sm:$0xf]
        %v1853 = vld [vmem:[%s595 + $0x24] sm:$0xf]
        %v1854 = vld [vmem:[%s595 + $0x28] sm:$0xf]
        %v1855 = vld [vmem:[%s595 + $0x2c] sm:$0xf]
        %v1856 = vld [vmem:[%s595 + $0x30] sm:$0xf]
        %v1857 = vld [vmem:[%s595 + $0x34] sm:$0xf]
        %v1858 = vld [vmem:[%s595 + $0x38] sm:$0xf]
        %v1859 = vld [vmem:[%s595 + $0x3c] sm:$0xf]
        %v1860 = vld [vmem:[%s598] sm:$0x1]
        %v1862 = vlaneseq
        %v1863 = vshrl.u32 %v1862, 7
        %v1864 = vsub.s32 0, %v1863
        %v1865 = vrot.slane %v1860, %v1864
        %v1883 = vunpack.c.l.b16 %v1844
        %v1884 = vunpack.c.l.b16 %v1845
        %v1885 = vunpack.c.l.b16 %v1846
        %v1886 = vunpack.c.l.b16 %v1847
        %v1887 = vunpack.c.l.b16 %v1848
        %v1888 = vunpack.c.l.b16 %v1849
        %v1889 = vunpack.c.l.b16 %v1850
        %v1890 = vunpack.c.l.b16 %v1851
        %v1891 = vunpack.c.l.b16 %v1852
        %v1892 = vunpack.c.l.b16 %v1853
        %v1893 = vunpack.c.l.b16 %v1854
        %v1894 = vunpack.c.l.b16 %v1855
        %v1895 = vunpack.c.l.b16 %v1856
        %v1896 = vunpack.c.l.b16 %v1857
        %v1897 = vunpack.c.l.b16 %v1858
        %v1898 = vunpack.c.l.b16 %v1859
        %v1899 = vpack.c.b16 %v1884, %v1883
        %v1900 = vpack.c.b16 %v1886, %v1885
        %v1901 = vpack.c.b16 %v1888, %v1887
        %v1902 = vpack.c.b16 %v1890, %v1889
        %v1903 = vpack.c.b16 %v1892, %v1891
        %v1904 = vpack.c.b16 %v1894, %v1893
        %v1905 = vpack.c.b16 %v1896, %v1895
        %v1906 = vpack.c.b16 %v1898, %v1897
        %1915 = vmatprep.subr.bf16.mxu0 0
        %1916 = vmatpush1.bf16.msra.mxu0 %v1899
        %1917 = vmatprep.subr.bf16.mxu0 0
        %1918 = vmatpush1.bf16.msra.mxu0 %v1900
        %1919 = vmatprep.subr.bf16.mxu0 0
        %1920 = vmatpush1.bf16.msra.mxu0 %v1901
        %1921 = vmatprep.subr.bf16.mxu0 0
        %1922 = vmatpush1.bf16.msra.mxu0 %v1902
        %1923 = vmatprep.subr.bf16.mxu0 0
        %1924 = vmatpush1.bf16.msra.mxu0 %v1903
        %1925 = vmatprep.subr.bf16.mxu0 0
        %1926 = vmatpush1.bf16.msra.mxu0 %v1904
        %1927 = vmatprep.subr.bf16.mxu0 0
        %1928 = vmatpush1.bf16.msra.mxu0 %v1905
        %1929 = vmatprep.subr.bf16.mxu0 0
        %1930 = vmatpush1.bf16.msra.mxu0 %v1906
        %1931 = vmatprep.subr.bf16.mxu0 0
        %1932 = vmatpush1.bf16.msra.mxu0 0
        %1933 = vmatprep.subr.bf16.mxu0 0
        %1934 = vmatpush1.bf16.msra.mxu0 0
        %1935 = vmatprep.subr.bf16.mxu0 0
        %1936 = vmatpush1.bf16.msra.mxu0 0
        %1937 = vmatprep.subr.bf16.mxu0 0
        %1938 = vmatpush1.bf16.msra.mxu0 0
        %1939 = vmatprep.subr.bf16.mxu0 0
        %1940 = vmatpush1.bf16.msra.mxu0 0
        %1941 = vmatprep.subr.bf16.mxu0 0
        %1942 = vmatpush1.bf16.msra.mxu0 0
        %1943 = vmatprep.subr.bf16.mxu0 0
        %1944 = vmatpush1.bf16.msra.mxu0 0
        %1945 = vmatprep.subr.bf16.mxu0 0
        %1946 = vmatpush1.bf16.msra.mxu0 0
        %1947 = vmatprep.mubr.bf16.mxu0 0
        %1948 = vmatmul.mubr.bf16.gmra.mrb[0].mxu0 %v1843
        %v1949 = vpop.f32.mrb[0].mxu0
        %v1950 = vadd.f32 %v1865, %v1949
        %v1951 = vpop.f32.mrb[0].mxu0
        %v1952 = vpop.f32.mrb[0].mxu0
        %v1953 = vadd.f32 %v1865, %v1952
        %v1954 = vpop.f32.mrb[0].mxu0
        %1955 = vdwg.mxu0
        %v1956 = vadd.f32 %v1715, %v1950
        %v1957 = vadd.f32 %v1716, %v1953
        %1958 = vst.msk [vmem:[#allocation2] sm:$0xff] %vm613, %v1956
        %1959 = vst.msk [vmem:[#allocation2 + $0x8] sm:$0xff] %vm613, %v1957
        // Predicated region
        $region77: #{tpu_custom_call.1} parent=71 // pred_check
          %p1960 = pneg %p371
        $region78: #{tpu_custom_call.1} parent=71 // pred_check_branch
          %1962 = sbr.rel (%p1960) target = $region80
        $region79: #{tpu_custom_call.1} parent=71 // pred_region
          %s1964 = ssub.s32 256, 256
          %1965 = vsyncadd [#allocation3], %s1964
          %s1966 = sshll.u32 [#allocation2], 4
          %s1967 = int_to_ptr.vmem [resolvable:$true] %s1966
          %1972 = dma.vmem_to_hbm [thread:$0]  %s1967, 256, %s13, [#allocation3], 128, 128, 8
        $region80: #{tpu_custom_call.1} parent=71 // pred_fallthru
          _
        // Predicated region
        $region81: #{tpu_custom_call.1} parent=71 // pred_check
          %p1973 = pneg %p371
        $region82: #{tpu_custom_call.1} parent=71 // pred_check_branch
          %1975 = sbr.rel (%p1973) target = $region84
        $region83: #{tpu_custom_call.1} parent=71 // pred_region
          %1976 = dma.done [#allocation3], 256
        $region84: #{tpu_custom_call.1} parent=71 // pred_fallthru
          _
      $region72: #{tpu_custom_call.1} parent=5 // pred_fallthru
        _
      %p1977 = scmp.le.s32.totalorder 2, %s20
      // Predicated region
      $region85: #{tpu_custom_call.1} parent=5 // pred_check
        %p1978 = pneg %p1977
      $region86: #{tpu_custom_call.1} parent=5 // pred_check_branch
        %1980 = sbr.rel (%p1978) target = $region88
      $region87: #{tpu_custom_call.1} parent=5 // pred_region
        %s1981 = ssub.s32 %s20, 2
      $region88: #{tpu_custom_call.1} parent=5 // pred_fallthru
        _
    $region6: #{tpu_custom_call.1} parent=1 // loop_footer
      %s24 = sadd.s32 1, %s20
    $region7: #{tpu_custom_call.1} parent=1 // loop_footer_branch
      %19 = sbr.rel target = $region3
    $region8: #{tpu_custom_call.1} parent=1 // loop_exit
      _
    %1982 = vsyncpa [#allocation3], 1
    %s1983 = scalar_lea.sflag [#allocation3], 1
    %1984 = vsyncpa %s1983, 1

</llo_original>
